<compile_context>
chip_gen: v7x
topology: tpu7x:2x2x1
jax: 0.10.0
libtpu: 0.0.40
codegen_flags: <defaults>
</compile_context>

<pallas_src>
import math

import jax
import jax.numpy as jnp
from jax.experimental import pallas as pl
from jax.experimental.pallas import tpu as pltpu

IN_FEATURES = 512
HIDDEN = 400
NCLASSES = 365

# Lane-aligned padded widths (multiples of 128). Zero padding is numerically
# exact: relu(0) = 0 and zero W2 rows/cols contribute nothing.
HIDDEN_PAD = 512     # 400 -> 512 (also a full MXU tile on the K axis of matmul 2)
NCLASSES_PAD = 384   # 365 -> 384 = 3 * 128 (lane-dense, 25% smaller than 512)


def _round_up(x, m):
    return ((x + m - 1) // m) * m


# --------------------------------------------------------------------------
# Kernel
# --------------------------------------------------------------------------
def classifier_kernel(x_ref, w1_ref, b1_ref, w2_ref, b2_ref, o_ref):
    # x_ref:  (TB, 512) f32        w1_ref: (512, 512) bf16   b1_ref: (1, 512) f32
    # w2_ref: (512, 384) bf16      b2_ref: (1, 384)  f32     o_ref:  (TB, 384)
    x = x_ref[...].astype(w1_ref.dtype)            # f32 -> bf16 cast on the VPU
    h = jnp.dot(x, w1_ref[...], preferred_element_type=jnp.float32) + b1_ref[...]
    h = jnp.maximum(h, 0.0)                        # torch.relu (f32)
    h = h.astype(w2_ref.dtype)                     # bf16 operand for the MXU
    o = jnp.dot(h, w2_ref[...], preferred_element_type=jnp.float32) + b2_ref[...]
    o_ref[...] = o.astype(o_ref.dtype)


# --------------------------------------------------------------------------
# One-time parameter preparation (hoisted out of the per-call path)
# --------------------------------------------------------------------------
def prepare_classifier_params(w1, b1, w2, b2, *, compute_dtype=jnp.bfloat16):
    """Zero-pad to lane-aligned widths and cast weights to the MXU dtype.

    w1: (512, 400), b1: (400,), w2: (400, 365), b2: (365,)   (all f32)
    Call once; pass the result to classifier_forward on every call.
    """
    w1p = jnp.zeros((IN_FEATURES, HIDDEN_PAD), jnp.float32).at[:, :HIDDEN].set(w1)
    b1p = jnp.zeros((1, HIDDEN_PAD), jnp.float32).at[0, :HIDDEN].set(b1)
    w2p = jnp.zeros((HIDDEN_PAD, NCLASSES_PAD), jnp.float32).at[:HIDDEN, :NCLASSES].set(w2)
    b2p = jnp.zeros((1, NCLASSES_PAD), jnp.float32).at[0, :NCLASSES].set(b2)
    return (w1p.astype(compute_dtype), b1p, w2p.astype(compute_dtype), b2p)


def _pick_tile_and_grid(B, batch_tile):
    """Batch tile (8-aligned) and grid size; >=2 steps for mid/large batches
    so the 'parallel' axis shards across both TensorCores on v7x."""
    b8 = _round_up(max(B, 1), 8)
    tile = min(batch_tile, b8)
    if b8 > 256 and pl.cdiv(B, tile) < 2:
        tile = max(256, _round_up(pl.cdiv(b8, 2), 8))
    return tile, pl.cdiv(B, tile)


# --------------------------------------------------------------------------
# Forward wrapper
# --------------------------------------------------------------------------
def classifier_forward(x, params, *, batch_tile=1024, out_dtype=jnp.float32,
                       slice_to_nclasses=True):
    """Fused relu(x @ W1 + b1) @ W2 + b2.

    x: (B, 512) f32; params = prepare_classifier_params(...).
    Returns (B, 365) by default, or the lane-padded (B, 384) result
    (padded columns are exact zeros) when slice_to_nclasses=False.
    """
    w1p, b1p, w2p, b2p = params
    B = x.shape[0]
    assert x.shape[1] == IN_FEATURES

    tile, steps = _pick_tile_and_grid(B, batch_tile)

    # VMEM @ tile=1024: x 2*2 MiB + out 2*1.5 MiB + weights ~1.75 MiB ≈ 9 MiB
    # -> comfortably inside even v7x's 64 MiB ceiling.
    out = pl.pallas_call(
        classifier_kernel,
        out_shape=jax.ShapeDtypeStruct((B, NCLASSES_PAD), out_dtype),
        grid_spec=pltpu.PrefetchScalarGridSpec(
            num_scalar_prefetch=0,
            grid=(steps,),
            in_specs=[
                pl.BlockSpec((tile, IN_FEATURES), lambda i: (i, 0)),
                # Constant index_map -> weights/biases stay VMEM-resident
                # across grid steps (no revisiting DMA).
                pl.BlockSpec((IN_FEATURES, HIDDEN_PAD), lambda i: (0, 0)),
                pl.BlockSpec((1, HIDDEN_PAD), lambda i: (0, 0)),
                pl.BlockSpec((HIDDEN_PAD, NCLASSES_PAD), lambda i: (0, 0)),
                pl.BlockSpec((1, NCLASSES_PAD), lambda i: (0, 0)),
            ],
            out_specs=pl.BlockSpec((tile, NCLASSES_PAD), lambda i: (i, 0)),
        ),
        compiler_params=pltpu.CompilerParams(
            dimension_semantics=("parallel",),
            vmem_limit_bytes=32 * 1024 * 1024,
        ),
    )(x, w1p, b1p, w2p, b2p)

    if slice_to_nclasses:
        # Extra HBM pass; skip it if the consumer tolerates the (B, 384)
        # lane-padded result (padded columns are exact zeros).
        return out[:, :NCLASSES]
    return out


# --------------------------------------------------------------------------
# Reference / init / demo
# --------------------------------------------------------------------------
def init_linear_params(key, fan_in, fan_out):
    # Mirror torch.nn.Linear default init: U(-1/sqrt(fan_in), 1/sqrt(fan_in)).
    kw, kb = jax.random.split(key)
    bound = 1.0 / math.sqrt(fan_in)
    # stored as (in, out) — transpose of torch's (out, in) — for x @ W
    w = jax.random.uniform(kw, (fan_in, fan_out), jnp.float32, -bound, bound)
    b = jax.random.uniform(kb, (fan_out,), jnp.float32, -bound, bound)
    return w, b


def reference_forward(x, w1, b1, w2, b2):
    h = jnp.maximum(x @ w1 + b1, 0.0)
    return h @ w2 + b2


if __name__ == "__main__":
    key = jax.random.PRNGKey(0)
    k_x, k_fc1, k_fc2 = jax.random.split(key, 3)

    w1, b1 = init_linear_params(k_fc1, IN_FEATURES, HIDDEN)
    w2, b2 = init_linear_params(k_fc2, HIDDEN, NCLASSES)

    # One-time param prep (padding + bf16 cast), reused across calls.
    params = prepare_classifier_params(w1, b1, w2, b2)
    params = jax.block_until_ready(params)

    # Small demo batch (single grid step, tile adapts down to 8 rows).
    B = 8
    x = jax.random.normal(k_x, (B, IN_FEATURES), jnp.float32)

    out = jax.block_until_ready(classifier_forward(x, params))
    ref = reference_forward(x, w1, b1, w2, b2)
    assert out.shape == (B, NCLASSES)
    # bf16 MXU operands (f32 accumulation) -> loosened tolerance vs f32 ref.
    assert jnp.allclose(out, ref, atol=3e-2, rtol=3e-2), "mismatch vs reference"

    # Multi-step / partial-last-tile path (B=300 -> tile=256, grid=(2,);
    # no jnp.pad of x, boundary tile is partial).
    B2 = 300
    x2 = jax.random.normal(jax.random.PRNGKey(1), (B2, IN_FEATURES), jnp.float32)
    out2 = jax.block_until_ready(classifier_forward(x2, params))
    ref2 = reference_forward(x2, w1, b1, w2, b2)
    assert out2.shape == (B2, NCLASSES)
    assert jnp.allclose(out2, ref2, atol=3e-2, rtol=3e-2), "mismatch vs reference (partial tile)"

    print("KERNEL_OK")
</pallas_src>

<mosaic_0001>
module attributes {stable_mosaic.version = 11 : i64} {
  func.func @classifier_kernel(%arg0: i32, %arg1: memref<8x512xf32, #tpu.memory_space<vmem>>, %arg2: memref<512x512xbf16, #tpu.memory_space<vmem>>, %arg3: memref<1x512xf32, #tpu.memory_space<vmem>>, %arg4: memref<512x384xbf16, #tpu.memory_space<vmem>>, %arg5: memref<1x384xf32, #tpu.memory_space<vmem>>, %arg6: memref<8x384xf32, #tpu.memory_space<vmem>>) attributes {dimension_semantics = [#tpu.dimension_semantics<parallel>], iteration_bounds = array<i64: 1>, scalar_prefetch = 0 : i64, scratch_operands = 0 : i64, tpu.core_type = #tpu.core_type<tc>, window_params = [{transform_indices = @transform_0, window_bounds = array<i64: 8, 512>}, {pipeline_mode = #tpu.pipeline_mode<synchronous>, transform_indices = @transform_1, window_bounds = array<i64: 512, 512>}, {pipeline_mode = #tpu.pipeline_mode<synchronous>, transform_indices = @transform_2, window_bounds = array<i64: 1, 512>}, {pipeline_mode = #tpu.pipeline_mode<synchronous>, transform_indices = @transform_3, window_bounds = array<i64: 512, 384>}, {pipeline_mode = #tpu.pipeline_mode<synchronous>, transform_indices = @transform_4, window_bounds = array<i64: 1, 384>}, {transform_indices = @transform_5, window_bounds = array<i64: 8, 384>}]} {
    %c0 = arith.constant 0 : index
    %c0_0 = arith.constant 0 : index
    %0 = vector.load %arg1[%c0, %c0_0] : memref<8x512xf32, #tpu.memory_space<vmem>>, vector<8x512xf32>
    %1 = arith.truncf %0 : vector<8x512xf32> to vector<8x512xbf16>
    %c0_1 = arith.constant 0 : index
    %c0_2 = arith.constant 0 : index
    %2 = vector.load %arg2[%c0_1, %c0_2] : memref<512x512xbf16, #tpu.memory_space<vmem>>, vector<512x512xbf16>
    %cst = arith.constant dense<0.000000e+00> : vector<8x512xf32>
    %3 = tpu.matmul %1, %2, %cst {dimension_numbers = #tpu.dot_dimension_numbers<[1], [0], [0], [1], [0, 0, 1, 1], [], []>} : vector<8x512xbf16>, vector<512x512xbf16>, vector<8x512xf32> -> vector<8x512xf32>
    %c0_3 = arith.constant 0 : index
    %c0_4 = arith.constant 0 : index
    %4 = vector.load %arg3[%c0_3, %c0_4] : memref<1x512xf32, #tpu.memory_space<vmem>>, vector<1x512xf32>
    %5 = vector.broadcast %4 : vector<1x512xf32> to vector<8x512xf32>
    %6 = arith.addf %3, %5 : vector<8x512xf32>
    %cst_5 = arith.constant 0.000000e+00 : f32
    %7 = vector.broadcast %cst_5 : f32 to vector<8x512xf32>
    %8 = arith.maximumf %6, %7 : vector<8x512xf32>
    %9 = arith.truncf %8 : vector<8x512xf32> to vector<8x512xbf16>
    %c0_6 = arith.constant 0 : index
    %c0_7 = arith.constant 0 : index
    %10 = vector.load %arg4[%c0_6, %c0_7] : memref<512x384xbf16, #tpu.memory_space<vmem>>, vector<512x384xbf16>
    %cst_8 = arith.constant dense<0.000000e+00> : vector<8x384xf32>
    %11 = tpu.matmul %9, %10, %cst_8 {dimension_numbers = #tpu.dot_dimension_numbers<[1], [0], [0], [1], [0, 0, 1, 1], [], []>} : vector<8x512xbf16>, vector<512x384xbf16>, vector<8x384xf32> -> vector<8x384xf32>
    %c0_9 = arith.constant 0 : index
    %c0_10 = arith.constant 0 : index
    %12 = vector.load %arg5[%c0_9, %c0_10] : memref<1x384xf32, #tpu.memory_space<vmem>>, vector<1x384xf32>
    %13 = vector.broadcast %12 : vector<1x384xf32> to vector<8x384xf32>
    %14 = arith.addf %11, %13 : vector<8x384xf32>
    %c0_11 = arith.constant 0 : index
    %c0_12 = arith.constant 0 : index
    %15 = vector.load %arg6[%c0_11, %c0_12] : memref<8x384xf32, #tpu.memory_space<vmem>>, vector<8x384xf32>
    tpu.vector_store %arg6[%c0_11, %c0_12], %14 {strides = array<i32>} : memref<8x384xf32, #tpu.memory_space<vmem>>, vector<8x384xf32>,
    return
  }
  func.func @transform_0(%arg0: i32) -> (i32, i32) {
    %c0_i32 = arith.constant 0 : i32
    %c0_i32_0 = arith.constant 0 : i32
    return %arg0, %c0_i32 : i32, i32
  }
  func.func @transform_1(%arg0: i32) -> (i32, i32) {
    %c0_i32 = arith.constant 0 : i32
    %c0_i32_0 = arith.constant 0 : i32
    %c0_i32_1 = arith.constant 0 : i32
    return %c0_i32, %c0_i32_0 : i32, i32
  }
  func.func @transform_2(%arg0: i32) -> (i32, i32) {
    %c0_i32 = arith.constant 0 : i32
    %c0_i32_0 = arith.constant 0 : i32
    %c0_i32_1 = arith.constant 0 : i32
    return %c0_i32, %c0_i32_0 : i32, i32
  }
  func.func @transform_3(%arg0: i32) -> (i32, i32) {
    %c0_i32 = arith.constant 0 : i32
    %c0_i32_0 = arith.constant 0 : i32
    %c0_i32_1 = arith.constant 0 : i32
    return %c0_i32, %c0_i32_0 : i32, i32
  }
  func.func @transform_4(%arg0: i32) -> (i32, i32) {
    %c0_i32 = arith.constant 0 : i32
    %c0_i32_0 = arith.constant 0 : i32
    %c0_i32_1 = arith.constant 0 : i32
    return %c0_i32, %c0_i32_0 : i32, i32
  }
  func.func @transform_5(%arg0: i32) -> (i32, i32) {
    %c0_i32 = arith.constant 0 : i32
    %c0_i32_0 = arith.constant 0 : i32
    return %arg0, %c0_i32 : i32, i32
  }
}

</mosaic_0001>

<llo_original>
// kernel: tpu_custom_call.1
$region0: #{tpu_custom_call.1}
  #allocation0 [shape = 'u32[]', space=smem, size = 0x4, offset = 0x4, fixed_abs, tag = 'smem constant byte address 0x4 - core index']
  #allocation1 [shape = 'u32[144,128]{1,0:T(1,128)}', space=vmem, size = 0x12000, scoped, tag = 'internal scratch']
  %s0 = inlined_call_operand.hbm [shape: f32[8,512], index: 0, kind: input, shape index: {}]
  %s1 = inlined_call_operand.hbm [shape: bf16[512,512], index: 1, kind: input, shape index: {}]
  %s2 = inlined_call_operand.vmem [shape: f32[1,512], index: 2, kind: input, shape index: {}]
  %s3 = inlined_call_operand.hbm [shape: bf16[512,384], index: 3, kind: input, shape index: {}]
  %s4 = inlined_call_operand.vmem [shape: f32[1,384], index: 4, kind: input, shape index: {}]
  %s5 = inlined_call_operand.hbm [shape: f32[8,384], index: 5, kind: output, shape index: {}]
  %s6 = sld [smem:[#allocation0]]
  $region42: #{tpu_custom_call.1} parent=0
    _
  %s8 = ssub.s32 1, %s6
  %s9 = scalar_select 0, %s8, %s6
  $region1: #{tpu_custom_call.1} parent=0
    #allocation2 [shape = 'u8[16384]{0}', space=vmem, size = 0x4000, scoped, tag = 'input window, operand 0, single buffered']
    #allocation3 [shape = 's32[1]{0}', space=sflag, size = 0x4, scoped, tag = 'scoped memory for tpu_custom_call.1']
    #allocation4 [shape = 's32[1]{0}', space=sflag, size = 0x4, scoped, tag = 'scoped memory for tpu_custom_call.1']
    #allocation5 [shape = 'u8[524288]{0}', space=vmem, size = 0x80000, scoped, tag = 'input window, operand 1, single buffered']
    #allocation6 [shape = 's32[1]{0}', space=sflag, size = 0x4, scoped, tag = 'scoped memory for tpu_custom_call.1']
    #allocation7 [shape = 'u8[393216]{0}', space=vmem, size = 0x60000, scoped, tag = 'input window, operand 3, single buffered']
    #allocation8 [shape = 'u8[12288]{0}', space=vmem, size = 0x3000, scoped, tag = 'output window, operand 0, single buffered']
    %10 = vsyncpa [#allocation3], 0
    %11 = vsyncpa [#allocation6], 0
    %12 = vsyncpa [#allocation4], 0
    // Predicated region
    $region2: #{tpu_custom_call.1} parent=1 // pred_check
      _
    $region3: #{tpu_custom_call.1} parent=1 // pred_check_branch
      %14 = sbr.rel (0) target = $region5
    $region4: #{tpu_custom_call.1} parent=1 // pred_region
      %s16 = ssub.s32 512, 512
      %17 = vsyncadd [#allocation3], %s16
      %s19 = sshll.u32 [#allocation2], 4
      %s20 = int_to_ptr.vmem [resolvable:$true] %s19
      %22 = dma.hbm_to_vmem [thread:$0]  %s0, 512, %s20, [#allocation3]
    $region5: #{tpu_custom_call.1} parent=1 // pred_fallthru
      _
    // Predicated region
    $region6: #{tpu_custom_call.1} parent=1 // pred_check
      _
    $region7: #{tpu_custom_call.1} parent=1 // pred_check_branch
      %24 = sbr.rel (0) target = $region9
    $region8: #{tpu_custom_call.1} parent=1 // pred_region
      %s26 = ssub.s32 16384, 16384
      %27 = vsyncadd [#allocation6], %s26
      %s28 = sshll.u32 [#allocation5], 4
      %s29 = int_to_ptr.vmem [resolvable:$true] %s28
      %34 = dma.hbm_to_vmem [thread:$0]  %s1, 16384, %s29, [#allocation6], 256, 256, 16
    $region9: #{tpu_custom_call.1} parent=1 // pred_fallthru
      _
    // Predicated region
    $region10: #{tpu_custom_call.1} parent=1 // pred_check
      _
    $region11: #{tpu_custom_call.1} parent=1 // pred_check_branch
      %36 = sbr.rel (0) target = $region13
    $region12: #{tpu_custom_call.1} parent=1 // pred_region
      _
    $region13: #{tpu_custom_call.1} parent=1 // pred_fallthru
      _
    // Predicated region
    $region14: #{tpu_custom_call.1} parent=1 // pred_check
      _
    $region15: #{tpu_custom_call.1} parent=1 // pred_check_branch
      %38 = sbr.rel (0) target = $region17
    $region16: #{tpu_custom_call.1} parent=1 // pred_region
      %s40 = ssub.s32 12288, 12288
      %41 = vsyncadd [#allocation6], %s40
      %s42 = sshll.u32 [#allocation7], 4
      %s43 = int_to_ptr.vmem [resolvable:$true] %s42
      %48 = dma.hbm_to_vmem [thread:$0]  %s3, 12288, %s43, [#allocation6], 192, 192, 12
    $region17: #{tpu_custom_call.1} parent=1 // pred_fallthru
      _
    // Predicated region
    $region18: #{tpu_custom_call.1} parent=1 // pred_check
      _
    $region19: #{tpu_custom_call.1} parent=1 // pred_check_branch
      %50 = sbr.rel (0) target = $region21
    $region20: #{tpu_custom_call.1} parent=1 // pred_region
      _
    $region21: #{tpu_custom_call.1} parent=1 // pred_fallthru
      _
    // Predicated region
    $region22: #{tpu_custom_call.1} parent=1 // pred_check
      _
    $region23: #{tpu_custom_call.1} parent=1 // pred_check_branch
      %52 = sbr.rel (0) target = $region25
    $region24: #{tpu_custom_call.1} parent=1 // pred_region
      %53 = dma.done [#allocation3], 512
    $region25: #{tpu_custom_call.1} parent=1 // pred_fallthru
      _
    // Predicated region
    $region26: #{tpu_custom_call.1} parent=1 // pred_check
      _
    $region27: #{tpu_custom_call.1} parent=1 // pred_check_branch
      %55 = sbr.rel (0) target = $region29
    $region28: #{tpu_custom_call.1} parent=1 // pred_region
      %56 = dma.done [#allocation6], 16384
    $region29: #{tpu_custom_call.1} parent=1 // pred_fallthru
      _
    // Predicated region
    $region30: #{tpu_custom_call.1} parent=1 // pred_check
      _
    $region31: #{tpu_custom_call.1} parent=1 // pred_check_branch
      %58 = sbr.rel (0) target = $region33
    $region32: #{tpu_custom_call.1} parent=1 // pred_region
      %59 = dma.done [#allocation6], 12288
    $region33: #{tpu_custom_call.1} parent=1 // pred_fallthru
      _
    %v61 = vld [vmem:[#allocation2] sm:$0xff]
    %v62 = vld [vmem:[#allocation2 + $0x8] sm:$0xff]
    %v63 = vld [vmem:[#allocation2 + $0x10] sm:$0xff]
    %v64 = vld [vmem:[#allocation2 + $0x18] sm:$0xff]
    %v65 = vpack.c.bf16 %v61, %v61
    %v66 = vpack.c.bf16 %v62, %v62
    %v67 = vpack.c.bf16 %v63, %v63
    %v68 = vpack.c.bf16 %v64, %v64
    %v69 = vld [vmem:[#allocation5] sm:$0xff]
    %v70 = vld [vmem:[#allocation5 + $0x8] sm:$0xff]
    %v71 = vld [vmem:[#allocation5 + $0x10] sm:$0xff]
    %v72 = vld [vmem:[#allocation5 + $0x18] sm:$0xff]
    %v73 = vld [vmem:[#allocation5 + $0x20] sm:$0xff]
    %v74 = vld [vmem:[#allocation5 + $0x28] sm:$0xff]
    %v75 = vld [vmem:[#allocation5 + $0x30] sm:$0xff]
    %v76 = vld [vmem:[#allocation5 + $0x38] sm:$0xff]
    %v77 = vld [vmem:[#allocation5 + $0x40] sm:$0xff]
    %v78 = vld [vmem:[#allocation5 + $0x48] sm:$0xff]
    %v79 = vld [vmem:[#allocation5 + $0x50] sm:$0xff]
    %v80 = vld [vmem:[#allocation5 + $0x58] sm:$0xff]
    %v81 = vld [vmem:[#allocation5 + $0x60] sm:$0xff]
    %v82 = vld [vmem:[#allocation5 + $0x68] sm:$0xff]
    %v83 = vld [vmem:[#allocation5 + $0x70] sm:$0xff]
    %v84 = vld [vmem:[#allocation5 + $0x78] sm:$0xff]
    %v85 = vld [vmem:[#allocation5 + $0x80] sm:$0xff]
    %v86 = vld [vmem:[#allocation5 + $0x88] sm:$0xff]
    %v87 = vld [vmem:[#allocation5 + $0x90] sm:$0xff]
    %v88 = vld [vmem:[#allocation5 + $0x98] sm:$0xff]
    %v89 = vld [vmem:[#allocation5 + $0xa0] sm:$0xff]
    %v90 = vld [vmem:[#allocation5 + $0xa8] sm:$0xff]
    %v91 = vld [vmem:[#allocation5 + $0xb0] sm:$0xff]
    %v92 = vld [vmem:[#allocation5 + $0xb8] sm:$0xff]
    %v93 = vld [vmem:[#allocation5 + $0xc0] sm:$0xff]
    %v94 = vld [vmem:[#allocation5 + $0xc8] sm:$0xff]
    %v95 = vld [vmem:[#allocation5 + $0xd0] sm:$0xff]
    %v96 = vld [vmem:[#allocation5 + $0xd8] sm:$0xff]
    %v97 = vld [vmem:[#allocation5 + $0xe0] sm:$0xff]
    %v98 = vld [vmem:[#allocation5 + $0xe8] sm:$0xff]
    %v99 = vld [vmem:[#allocation5 + $0xf0] sm:$0xff]
    %v100 = vld [vmem:[#allocation5 + $0xf8] sm:$0xff]
    %v101 = vld [vmem:[#allocation5 + $0x100] sm:$0xff]
    %v102 = vld [vmem:[#allocation5 + $0x108] sm:$0xff]
    %v103 = vld [vmem:[#allocation5 + $0x110] sm:$0xff]
    %v104 = vld [vmem:[#allocation5 + $0x118] sm:$0xff]
    %v105 = vld [vmem:[#allocation5 + $0x120] sm:$0xff]
    %v106 = vld [vmem:[#allocation5 + $0x128] sm:$0xff]
    %v107 = vld [vmem:[#allocation5 + $0x130] sm:$0xff]
    %v108 = vld [vmem:[#allocation5 + $0x138] sm:$0xff]
    %v109 = vld [vmem:[#allocation5 + $0x140] sm:$0xff]
    %v110 = vld [vmem:[#allocation5 + $0x148] sm:$0xff]
    %v111 = vld [vmem:[#allocation5 + $0x150] sm:$0xff]
    %v112 = vld [vmem:[#allocation5 + $0x158] sm:$0xff]
    %v113 = vld [vmem:[#allocation5 + $0x160] sm:$0xff]
    %v114 = vld [vmem:[#allocation5 + $0x168] sm:$0xff]
    %v115 = vld [vmem:[#allocation5 + $0x170] sm:$0xff]
    %v116 = vld [vmem:[#allocation5 + $0x178] sm:$0xff]
    %v117 = vld [vmem:[#allocation5 + $0x180] sm:$0xff]
    %v118 = vld [vmem:[#allocation5 + $0x188] sm:$0xff]
    %v119 = vld [vmem:[#allocation5 + $0x190] sm:$0xff]
    %v120 = vld [vmem:[#allocation5 + $0x198] sm:$0xff]
    %v121 = vld [vmem:[#allocation5 + $0x1a0] sm:$0xff]
    %v122 = vld [vmem:[#allocation5 + $0x1a8] sm:$0xff]
    %v123 = vld [vmem:[#allocation5 + $0x1b0] sm:$0xff]
    %v124 = vld [vmem:[#allocation5 + $0x1b8] sm:$0xff]
    %v125 = vld [vmem:[#allocation5 + $0x1c0] sm:$0xff]
    %v126 = vld [vmem:[#allocation5 + $0x1c8] sm:$0xff]
    %v127 = vld [vmem:[#allocation5 + $0x1d0] sm:$0xff]
    %v128 = vld [vmem:[#allocation5 + $0x1d8] sm:$0xff]
    %v129 = vld [vmem:[#allocation5 + $0x1e0] sm:$0xff]
    %v130 = vld [vmem:[#allocation5 + $0x1e8] sm:$0xff]
    %v131 = vld [vmem:[#allocation5 + $0x1f0] sm:$0xff]
    %v132 = vld [vmem:[#allocation5 + $0x1f8] sm:$0xff]
    %v133 = vld [vmem:[#allocation5 + $0x200] sm:$0xff]
    %v134 = vld [vmem:[#allocation5 + $0x208] sm:$0xff]
    %v135 = vld [vmem:[#allocation5 + $0x210] sm:$0xff]
    %v136 = vld [vmem:[#allocation5 + $0x218] sm:$0xff]
    %v137 = vld [vmem:[#allocation5 + $0x220] sm:$0xff]
    %v138 = vld [vmem:[#allocation5 + $0x228] sm:$0xff]
    %v139 = vld [vmem:[#allocation5 + $0x230] sm:$0xff]
    %v140 = vld [vmem:[#allocation5 + $0x238] sm:$0xff]
    %v141 = vld [vmem:[#allocation5 + $0x240] sm:$0xff]
    %v142 = vld [vmem:[#allocation5 + $0x248] sm:$0xff]
    %v143 = vld [vmem:[#allocation5 + $0x250] sm:$0xff]
    %v144 = vld [vmem:[#allocation5 + $0x258] sm:$0xff]
    %v145 = vld [vmem:[#allocation5 + $0x260] sm:$0xff]
    %v146 = vld [vmem:[#allocation5 + $0x268] sm:$0xff]
    %v147 = vld [vmem:[#allocation5 + $0x270] sm:$0xff]
    %v148 = vld [vmem:[#allocation5 + $0x278] sm:$0xff]
    %v149 = vld [vmem:[#allocation5 + $0x280] sm:$0xff]
    %v150 = vld [vmem:[#allocation5 + $0x288] sm:$0xff]
    %v151 = vld [vmem:[#allocation5 + $0x290] sm:$0xff]
    %v152 = vld [vmem:[#allocation5 + $0x298] sm:$0xff]
    %v153 = vld [vmem:[#allocation5 + $0x2a0] sm:$0xff]
    %v154 = vld [vmem:[#allocation5 + $0x2a8] sm:$0xff]
    %v155 = vld [vmem:[#allocation5 + $0x2b0] sm:$0xff]
    %v156 = vld [vmem:[#allocation5 + $0x2b8] sm:$0xff]
    %v157 = vld [vmem:[#allocation5 + $0x2c0] sm:$0xff]
    %v158 = vld [vmem:[#allocation5 + $0x2c8] sm:$0xff]
    %v159 = vld [vmem:[#allocation5 + $0x2d0] sm:$0xff]
    %v160 = vld [vmem:[#allocation5 + $0x2d8] sm:$0xff]
    %v161 = vld [vmem:[#allocation5 + $0x2e0] sm:$0xff]
    %v162 = vld [vmem:[#allocation5 + $0x2e8] sm:$0xff]
    %v163 = vld [vmem:[#allocation5 + $0x2f0] sm:$0xff]
    %v164 = vld [vmem:[#allocation5 + $0x2f8] sm:$0xff]
    %v165 = vld [vmem:[#allocation5 + $0x300] sm:$0xff]
    %v166 = vld [vmem:[#allocation5 + $0x308] sm:$0xff]
    %v167 = vld [vmem:[#allocation5 + $0x310] sm:$0xff]
    %v168 = vld [vmem:[#allocation5 + $0x318] sm:$0xff]
    %v169 = vld [vmem:[#allocation5 + $0x320] sm:$0xff]
    %v170 = vld [vmem:[#allocation5 + $0x328] sm:$0xff]
    %v171 = vld [vmem:[#allocation5 + $0x330] sm:$0xff]
    %v172 = vld [vmem:[#allocation5 + $0x338] sm:$0xff]
    %v173 = vld [vmem:[#allocation5 + $0x340] sm:$0xff]
    %v174 = vld [vmem:[#allocation5 + $0x348] sm:$0xff]
    %v175 = vld [vmem:[#allocation5 + $0x350] sm:$0xff]
    %v176 = vld [vmem:[#allocation5 + $0x358] sm:$0xff]
    %v177 = vld [vmem:[#allocation5 + $0x360] sm:$0xff]
    %v178 = vld [vmem:[#allocation5 + $0x368] sm:$0xff]
    %v179 = vld [vmem:[#allocation5 + $0x370] sm:$0xff]
    %v180 = vld [vmem:[#allocation5 + $0x378] sm:$0xff]
    %v181 = vld [vmem:[#allocation5 + $0x380] sm:$0xff]
    %v182 = vld [vmem:[#allocation5 + $0x388] sm:$0xff]
    %v183 = vld [vmem:[#allocation5 + $0x390] sm:$0xff]
    %v184 = vld [vmem:[#allocation5 + $0x398] sm:$0xff]
    %v185 = vld [vmem:[#allocation5 + $0x3a0] sm:$0xff]
    %v186 = vld [vmem:[#allocation5 + $0x3a8] sm:$0xff]
    %v187 = vld [vmem:[#allocation5 + $0x3b0] sm:$0xff]
    %v188 = vld [vmem:[#allocation5 + $0x3b8] sm:$0xff]
    %v189 = vld [vmem:[#allocation5 + $0x3c0] sm:$0xff]
    %v190 = vld [vmem:[#allocation5 + $0x3c8] sm:$0xff]
    %v191 = vld [vmem:[#allocation5 + $0x3d0] sm:$0xff]
    %v192 = vld [vmem:[#allocation5 + $0x3d8] sm:$0xff]
    %v193 = vld [vmem:[#allocation5 + $0x3e0] sm:$0xff]
    %v194 = vld [vmem:[#allocation5 + $0x3e8] sm:$0xff]
    %v195 = vld [vmem:[#allocation5 + $0x3f0] sm:$0xff]
    %v196 = vld [vmem:[#allocation5 + $0x3f8] sm:$0xff]
    %v197 = vld [vmem:[%s2] sm:$0xf]
    %v199 = vlaneseq
    %v200 = vshrl.u32 %v199, 7
    %v201 = vsub.s32 0, %v200
    %v202 = vrot.slane %v197, %v201
    %v203 = vlaneseq
    %v204 = vshrl.u32 %v203, 7
    %v205 = vsub.s32 1, %v204
    %v206 = vrot.slane %v197, %v205
    %v207 = vlaneseq
    %v208 = vshrl.u32 %v207, 7
    %v209 = vsub.s32 2, %v208
    %v210 = vrot.slane %v197, %v209
    %v211 = vlaneseq
    %v212 = vshrl.u32 %v211, 7
    %v213 = vsub.s32 3, %v212
    %v214 = vrot.slane %v197, %v213
    %v347 = vunpack.c.l.b16 %v69
    %v348 = vunpack.c.h.b16 %v69
    %v349 = vunpack.c.l.b16 %v70
    %v350 = vunpack.c.h.b16 %v70
    %v351 = vunpack.c.l.b16 %v71
    %v352 = vunpack.c.h.b16 %v71
    %v353 = vunpack.c.l.b16 %v72
    %v354 = vunpack.c.h.b16 %v72
    %v355 = vunpack.c.l.b16 %v73
    %v356 = vunpack.c.h.b16 %v73
    %v357 = vunpack.c.l.b16 %v74
    %v358 = vunpack.c.h.b16 %v74
    %v359 = vunpack.c.l.b16 %v75
    %v360 = vunpack.c.h.b16 %v75
    %v361 = vunpack.c.l.b16 %v76
    %v362 = vunpack.c.h.b16 %v76
    %v363 = vunpack.c.l.b16 %v77
    %v364 = vunpack.c.h.b16 %v77
    %v365 = vunpack.c.l.b16 %v78
    %v366 = vunpack.c.h.b16 %v78
    %v367 = vunpack.c.l.b16 %v79
    %v368 = vunpack.c.h.b16 %v79
    %v369 = vunpack.c.l.b16 %v80
    %v370 = vunpack.c.h.b16 %v80
    %v371 = vunpack.c.l.b16 %v81
    %v372 = vunpack.c.h.b16 %v81
    %v373 = vunpack.c.l.b16 %v82
    %v374 = vunpack.c.h.b16 %v82
    %v375 = vunpack.c.l.b16 %v83
    %v376 = vunpack.c.h.b16 %v83
    %v377 = vunpack.c.l.b16 %v84
    %v378 = vunpack.c.h.b16 %v84
    %v379 = vunpack.c.l.b16 %v85
    %v380 = vunpack.c.h.b16 %v85
    %v381 = vunpack.c.l.b16 %v86
    %v382 = vunpack.c.h.b16 %v86
    %v383 = vunpack.c.l.b16 %v87
    %v384 = vunpack.c.h.b16 %v87
    %v385 = vunpack.c.l.b16 %v88
    %v386 = vunpack.c.h.b16 %v88
    %v387 = vunpack.c.l.b16 %v89
    %v388 = vunpack.c.h.b16 %v89
    %v389 = vunpack.c.l.b16 %v90
    %v390 = vunpack.c.h.b16 %v90
    %v391 = vunpack.c.l.b16 %v91
    %v392 = vunpack.c.h.b16 %v91
    %v393 = vunpack.c.l.b16 %v92
    %v394 = vunpack.c.h.b16 %v92
    %v395 = vunpack.c.l.b16 %v93
    %v396 = vunpack.c.h.b16 %v93
    %v397 = vunpack.c.l.b16 %v94
    %v398 = vunpack.c.h.b16 %v94
    %v399 = vunpack.c.l.b16 %v95
    %v400 = vunpack.c.h.b16 %v95
    %v401 = vunpack.c.l.b16 %v96
    %v402 = vunpack.c.h.b16 %v96
    %v403 = vunpack.c.l.b16 %v97
    %v404 = vunpack.c.h.b16 %v97
    %v405 = vunpack.c.l.b16 %v98
    %v406 = vunpack.c.h.b16 %v98
    %v407 = vunpack.c.l.b16 %v99
    %v408 = vunpack.c.h.b16 %v99
    %v409 = vunpack.c.l.b16 %v100
    %v410 = vunpack.c.h.b16 %v100
    %v411 = vunpack.c.l.b16 %v101
    %v412 = vunpack.c.h.b16 %v101
    %v413 = vunpack.c.l.b16 %v102
    %v414 = vunpack.c.h.b16 %v102
    %v415 = vunpack.c.l.b16 %v103
    %v416 = vunpack.c.h.b16 %v103
    %v417 = vunpack.c.l.b16 %v104
    %v418 = vunpack.c.h.b16 %v104
    %v419 = vunpack.c.l.b16 %v105
    %v420 = vunpack.c.h.b16 %v105
    %v421 = vunpack.c.l.b16 %v106
    %v422 = vunpack.c.h.b16 %v106
    %v423 = vunpack.c.l.b16 %v107
    %v424 = vunpack.c.h.b16 %v107
    %v425 = vunpack.c.l.b16 %v108
    %v426 = vunpack.c.h.b16 %v108
    %v427 = vunpack.c.l.b16 %v109
    %v428 = vunpack.c.h.b16 %v109
    %v429 = vunpack.c.l.b16 %v110
    %v430 = vunpack.c.h.b16 %v110
    %v431 = vunpack.c.l.b16 %v111
    %v432 = vunpack.c.h.b16 %v111
    %v433 = vunpack.c.l.b16 %v112
    %v434 = vunpack.c.h.b16 %v112
    %v435 = vunpack.c.l.b16 %v113
    %v436 = vunpack.c.h.b16 %v113
    %v437 = vunpack.c.l.b16 %v114
    %v438 = vunpack.c.h.b16 %v114
    %v439 = vunpack.c.l.b16 %v115
    %v440 = vunpack.c.h.b16 %v115
    %v441 = vunpack.c.l.b16 %v116
    %v442 = vunpack.c.h.b16 %v116
    %v443 = vunpack.c.l.b16 %v117
    %v444 = vunpack.c.h.b16 %v117
    %v445 = vunpack.c.l.b16 %v118
    %v446 = vunpack.c.h.b16 %v118
    %v447 = vunpack.c.l.b16 %v119
    %v448 = vunpack.c.h.b16 %v119
    %v449 = vunpack.c.l.b16 %v120
    %v450 = vunpack.c.h.b16 %v120
    %v451 = vunpack.c.l.b16 %v121
    %v452 = vunpack.c.h.b16 %v121
    %v453 = vunpack.c.l.b16 %v122
    %v454 = vunpack.c.h.b16 %v122
    %v455 = vunpack.c.l.b16 %v123
    %v456 = vunpack.c.h.b16 %v123
    %v457 = vunpack.c.l.b16 %v124
    %v458 = vunpack.c.h.b16 %v124
    %v459 = vunpack.c.l.b16 %v125
    %v460 = vunpack.c.h.b16 %v125
    %v461 = vunpack.c.l.b16 %v126
    %v462 = vunpack.c.h.b16 %v126
    %v463 = vunpack.c.l.b16 %v127
    %v464 = vunpack.c.h.b16 %v127
    %v465 = vunpack.c.l.b16 %v128
    %v466 = vunpack.c.h.b16 %v128
    %v467 = vunpack.c.l.b16 %v129
    %v468 = vunpack.c.h.b16 %v129
    %v469 = vunpack.c.l.b16 %v130
    %v470 = vunpack.c.h.b16 %v130
    %v471 = vunpack.c.l.b16 %v131
    %v472 = vunpack.c.h.b16 %v131
    %v473 = vunpack.c.l.b16 %v132
    %v474 = vunpack.c.h.b16 %v132
    %v475 = vunpack.c.l.b16 %v133
    %v476 = vunpack.c.h.b16 %v133
    %v477 = vunpack.c.l.b16 %v134
    %v478 = vunpack.c.h.b16 %v134
    %v479 = vunpack.c.l.b16 %v135
    %v480 = vunpack.c.h.b16 %v135
    %v481 = vunpack.c.l.b16 %v136
    %v482 = vunpack.c.h.b16 %v136
    %v483 = vunpack.c.l.b16 %v137
    %v484 = vunpack.c.h.b16 %v137
    %v485 = vunpack.c.l.b16 %v138
    %v486 = vunpack.c.h.b16 %v138
    %v487 = vunpack.c.l.b16 %v139
    %v488 = vunpack.c.h.b16 %v139
    %v489 = vunpack.c.l.b16 %v140
    %v490 = vunpack.c.h.b16 %v140
    %v491 = vunpack.c.l.b16 %v141
    %v492 = vunpack.c.h.b16 %v141
    %v493 = vunpack.c.l.b16 %v142
    %v494 = vunpack.c.h.b16 %v142
    %v495 = vunpack.c.l.b16 %v143
    %v496 = vunpack.c.h.b16 %v143
    %v497 = vunpack.c.l.b16 %v144
    %v498 = vunpack.c.h.b16 %v144
    %v499 = vunpack.c.l.b16 %v145
    %v500 = vunpack.c.h.b16 %v145
    %v501 = vunpack.c.l.b16 %v146
    %v502 = vunpack.c.h.b16 %v146
    %v503 = vunpack.c.l.b16 %v147
    %v504 = vunpack.c.h.b16 %v147
    %v505 = vunpack.c.l.b16 %v148
    %v506 = vunpack.c.h.b16 %v148
    %v507 = vunpack.c.l.b16 %v149
    %v508 = vunpack.c.h.b16 %v149
    %v509 = vunpack.c.l.b16 %v150
    %v510 = vunpack.c.h.b16 %v150
    %v511 = vunpack.c.l.b16 %v151
    %v512 = vunpack.c.h.b16 %v151
    %v513 = vunpack.c.l.b16 %v152
    %v514 = vunpack.c.h.b16 %v152
    %v515 = vunpack.c.l.b16 %v153
    %v516 = vunpack.c.h.b16 %v153
    %v517 = vunpack.c.l.b16 %v154
    %v518 = vunpack.c.h.b16 %v154
    %v519 = vunpack.c.l.b16 %v155
    %v520 = vunpack.c.h.b16 %v155
    %v521 = vunpack.c.l.b16 %v156
    %v522 = vunpack.c.h.b16 %v156
    %v523 = vunpack.c.l.b16 %v157
    %v524 = vunpack.c.h.b16 %v157
    %v525 = vunpack.c.l.b16 %v158
    %v526 = vunpack.c.h.b16 %v158
    %v527 = vunpack.c.l.b16 %v159
    %v528 = vunpack.c.h.b16 %v159
    %v529 = vunpack.c.l.b16 %v160
    %v530 = vunpack.c.h.b16 %v160
    %v531 = vunpack.c.l.b16 %v161
    %v532 = vunpack.c.h.b16 %v161
    %v533 = vunpack.c.l.b16 %v162
    %v534 = vunpack.c.h.b16 %v162
    %v535 = vunpack.c.l.b16 %v163
    %v536 = vunpack.c.h.b16 %v163
    %v537 = vunpack.c.l.b16 %v164
    %v538 = vunpack.c.h.b16 %v164
    %v539 = vunpack.c.l.b16 %v165
    %v540 = vunpack.c.h.b16 %v165
    %v541 = vunpack.c.l.b16 %v166
    %v542 = vunpack.c.h.b16 %v166
    %v543 = vunpack.c.l.b16 %v167
    %v544 = vunpack.c.h.b16 %v167
    %v545 = vunpack.c.l.b16 %v168
    %v546 = vunpack.c.h.b16 %v168
    %v547 = vunpack.c.l.b16 %v169
    %v548 = vunpack.c.h.b16 %v169
    %v549 = vunpack.c.l.b16 %v170
    %v550 = vunpack.c.h.b16 %v170
    %v551 = vunpack.c.l.b16 %v171
    %v552 = vunpack.c.h.b16 %v171
    %v553 = vunpack.c.l.b16 %v172
    %v554 = vunpack.c.h.b16 %v172
    %v555 = vunpack.c.l.b16 %v173
    %v556 = vunpack.c.h.b16 %v173
    %v557 = vunpack.c.l.b16 %v174
    %v558 = vunpack.c.h.b16 %v174
    %v559 = vunpack.c.l.b16 %v175
    %v560 = vunpack.c.h.b16 %v175
    %v561 = vunpack.c.l.b16 %v176
    %v562 = vunpack.c.h.b16 %v176
    %v563 = vunpack.c.l.b16 %v177
    %v564 = vunpack.c.h.b16 %v177
    %v565 = vunpack.c.l.b16 %v178
    %v566 = vunpack.c.h.b16 %v178
    %v567 = vunpack.c.l.b16 %v179
    %v568 = vunpack.c.h.b16 %v179
    %v569 = vunpack.c.l.b16 %v180
    %v570 = vunpack.c.h.b16 %v180
    %v571 = vunpack.c.l.b16 %v181
    %v572 = vunpack.c.h.b16 %v181
    %v573 = vunpack.c.l.b16 %v182
    %v574 = vunpack.c.h.b16 %v182
    %v575 = vunpack.c.l.b16 %v183
    %v576 = vunpack.c.h.b16 %v183
    %v577 = vunpack.c.l.b16 %v184
    %v578 = vunpack.c.h.b16 %v184
    %v579 = vunpack.c.l.b16 %v185
    %v580 = vunpack.c.h.b16 %v185
    %v581 = vunpack.c.l.b16 %v186
    %v582 = vunpack.c.h.b16 %v186
    %v583 = vunpack.c.l.b16 %v187
    %v584 = vunpack.c.h.b16 %v187
    %v585 = vunpack.c.l.b16 %v188
    %v586 = vunpack.c.h.b16 %v188
    %v587 = vunpack.c.l.b16 %v189
    %v588 = vunpack.c.h.b16 %v189
    %v589 = vunpack.c.l.b16 %v190
    %v590 = vunpack.c.h.b16 %v190
    %v591 = vunpack.c.l.b16 %v191
    %v592 = vunpack.c.h.b16 %v191
    %v593 = vunpack.c.l.b16 %v192
    %v594 = vunpack.c.h.b16 %v192
    %v595 = vunpack.c.l.b16 %v193
    %v596 = vunpack.c.h.b16 %v193
    %v597 = vunpack.c.l.b16 %v194
    %v598 = vunpack.c.h.b16 %v194
    %v599 = vunpack.c.l.b16 %v195
    %v600 = vunpack.c.h.b16 %v195
    %v601 = vunpack.c.l.b16 %v196
    %v602 = vunpack.c.h.b16 %v196
    %v603 = vpack.c.b16 %v351, %v347
    %v604 = vpack.c.b16 %v352, %v348
    %v605 = vpack.c.b16 %v353, %v349
    %v606 = vpack.c.b16 %v354, %v350
    %v607 = vpack.c.b16 %v359, %v355
    %v608 = vpack.c.b16 %v360, %v356
    %v609 = vpack.c.b16 %v361, %v357
    %v610 = vpack.c.b16 %v362, %v358
    %v611 = vpack.c.b16 %v367, %v363
    %v612 = vpack.c.b16 %v368, %v364
    %v613 = vpack.c.b16 %v369, %v365
    %v614 = vpack.c.b16 %v370, %v366
    %v615 = vpack.c.b16 %v375, %v371
    %v616 = vpack.c.b16 %v376, %v372
    %v617 = vpack.c.b16 %v377, %v373
    %v618 = vpack.c.b16 %v378, %v374
    %v619 = vpack.c.b16 %v383, %v379
    %v620 = vpack.c.b16 %v384, %v380
    %v621 = vpack.c.b16 %v385, %v381
    %v622 = vpack.c.b16 %v386, %v382
    %v623 = vpack.c.b16 %v391, %v387
    %v624 = vpack.c.b16 %v392, %v388
    %v625 = vpack.c.b16 %v393, %v389
    %v626 = vpack.c.b16 %v394, %v390
    %v627 = vpack.c.b16 %v399, %v395
    %v628 = vpack.c.b16 %v400, %v396
    %v629 = vpack.c.b16 %v401, %v397
    %v630 = vpack.c.b16 %v402, %v398
    %v631 = vpack.c.b16 %v407, %v403
    %v632 = vpack.c.b16 %v408, %v404
    %v633 = vpack.c.b16 %v409, %v405
    %v634 = vpack.c.b16 %v410, %v406
    %v635 = vpack.c.b16 %v415, %v411
    %v636 = vpack.c.b16 %v416, %v412
    %v637 = vpack.c.b16 %v417, %v413
    %v638 = vpack.c.b16 %v418, %v414
    %v639 = vpack.c.b16 %v423, %v419
    %v640 = vpack.c.b16 %v424, %v420
    %v641 = vpack.c.b16 %v425, %v421
    %v642 = vpack.c.b16 %v426, %v422
    %v643 = vpack.c.b16 %v431, %v427
    %v644 = vpack.c.b16 %v432, %v428
    %v645 = vpack.c.b16 %v433, %v429
    %v646 = vpack.c.b16 %v434, %v430
    %v647 = vpack.c.b16 %v439, %v435
    %v648 = vpack.c.b16 %v440, %v436
    %v649 = vpack.c.b16 %v441, %v437
    %v650 = vpack.c.b16 %v442, %v438
    %v651 = vpack.c.b16 %v447, %v443
    %v652 = vpack.c.b16 %v448, %v444
    %v653 = vpack.c.b16 %v449, %v445
    %v654 = vpack.c.b16 %v450, %v446
    %v655 = vpack.c.b16 %v455, %v451
    %v656 = vpack.c.b16 %v456, %v452
    %v657 = vpack.c.b16 %v457, %v453
    %v658 = vpack.c.b16 %v458, %v454
    %v659 = vpack.c.b16 %v463, %v459
    %v660 = vpack.c.b16 %v464, %v460
    %v661 = vpack.c.b16 %v465, %v461
    %v662 = vpack.c.b16 %v466, %v462
    %v663 = vpack.c.b16 %v471, %v467
    %v664 = vpack.c.b16 %v472, %v468
    %v665 = vpack.c.b16 %v473, %v469
    %v666 = vpack.c.b16 %v474, %v470
    %v667 = vpack.c.b16 %v479, %v475
    %v668 = vpack.c.b16 %v480, %v476
    %v669 = vpack.c.b16 %v481, %v477
    %v670 = vpack.c.b16 %v482, %v478
    %v671 = vpack.c.b16 %v487, %v483
    %v672 = vpack.c.b16 %v488, %v484
    %v673 = vpack.c.b16 %v489, %v485
    %v674 = vpack.c.b16 %v490, %v486
    %v675 = vpack.c.b16 %v495, %v491
    %v676 = vpack.c.b16 %v496, %v492
    %v677 = vpack.c.b16 %v497, %v493
    %v678 = vpack.c.b16 %v498, %v494
    %v679 = vpack.c.b16 %v503, %v499
    %v680 = vpack.c.b16 %v504, %v500
    %v681 = vpack.c.b16 %v505, %v501
    %v682 = vpack.c.b16 %v506, %v502
    %v683 = vpack.c.b16 %v511, %v507
    %v684 = vpack.c.b16 %v512, %v508
    %v685 = vpack.c.b16 %v513, %v509
    %v686 = vpack.c.b16 %v514, %v510
    %v687 = vpack.c.b16 %v519, %v515
    %v688 = vpack.c.b16 %v520, %v516
    %v689 = vpack.c.b16 %v521, %v517
    %v690 = vpack.c.b16 %v522, %v518
    %v691 = vpack.c.b16 %v527, %v523
    %v692 = vpack.c.b16 %v528, %v524
    %v693 = vpack.c.b16 %v529, %v525
    %v694 = vpack.c.b16 %v530, %v526
    %v695 = vpack.c.b16 %v535, %v531
    %v696 = vpack.c.b16 %v536, %v532
    %v697 = vpack.c.b16 %v537, %v533
    %v698 = vpack.c.b16 %v538, %v534
    %v699 = vpack.c.b16 %v543, %v539
    %v700 = vpack.c.b16 %v544, %v540
    %v701 = vpack.c.b16 %v545, %v541
    %v702 = vpack.c.b16 %v546, %v542
    %v703 = vpack.c.b16 %v551, %v547
    %v704 = vpack.c.b16 %v552, %v548
    %v705 = vpack.c.b16 %v553, %v549
    %v706 = vpack.c.b16 %v554, %v550
    %v707 = vpack.c.b16 %v559, %v555
    %v708 = vpack.c.b16 %v560, %v556
    %v709 = vpack.c.b16 %v561, %v557
    %v710 = vpack.c.b16 %v562, %v558
    %v711 = vpack.c.b16 %v567, %v563
    %v712 = vpack.c.b16 %v568, %v564
    %v713 = vpack.c.b16 %v569, %v565
    %v714 = vpack.c.b16 %v570, %v566
    %v715 = vpack.c.b16 %v575, %v571
    %v716 = vpack.c.b16 %v576, %v572
    %v717 = vpack.c.b16 %v577, %v573
    %v718 = vpack.c.b16 %v578, %v574
    %v719 = vpack.c.b16 %v583, %v579
    %v720 = vpack.c.b16 %v584, %v580
    %v721 = vpack.c.b16 %v585, %v581
    %v722 = vpack.c.b16 %v586, %v582
    %v723 = vpack.c.b16 %v591, %v587
    %v724 = vpack.c.b16 %v592, %v588
    %v725 = vpack.c.b16 %v593, %v589
    %v726 = vpack.c.b16 %v594, %v590
    %v727 = vpack.c.b16 %v599, %v595
    %v728 = vpack.c.b16 %v600, %v596
    %v729 = vpack.c.b16 %v601, %v597
    %v730 = vpack.c.b16 %v602, %v598
    %859 = vmatprep.subr.bf16.mxu0 %v604
    %860 = vmatpush1.bf16.msra.mxu0 %v603
    %861 = vmatprep.subr.bf16.mxu0 %v608
    %862 = vmatpush1.bf16.msra.mxu0 %v607
    %863 = vmatprep.subr.bf16.mxu0 %v612
    %864 = vmatpush1.bf16.msra.mxu0 %v611
    %865 = vmatprep.subr.bf16.mxu0 %v616
    %866 = vmatpush1.bf16.msra.mxu0 %v615
    %867 = vmatprep.subr.bf16.mxu0 %v620
    %868 = vmatpush1.bf16.msra.mxu0 %v619
    %869 = vmatprep.subr.bf16.mxu0 %v624
    %870 = vmatpush1.bf16.msra.mxu0 %v623
    %871 = vmatprep.subr.bf16.mxu0 %v628
    %872 = vmatpush1.bf16.msra.mxu0 %v627
    %873 = vmatprep.subr.bf16.mxu0 %v632
    %874 = vmatpush1.bf16.msra.mxu0 %v631
    %875 = vmatprep.subr.bf16.mxu0 %v636
    %876 = vmatpush1.bf16.msra.mxu0 %v635
    %877 = vmatprep.subr.bf16.mxu0 %v640
    %878 = vmatpush1.bf16.msra.mxu0 %v639
    %879 = vmatprep.subr.bf16.mxu0 %v644
    %880 = vmatpush1.bf16.msra.mxu0 %v643
    %881 = vmatprep.subr.bf16.mxu0 %v648
    %882 = vmatpush1.bf16.msra.mxu0 %v647
    %883 = vmatprep.subr.bf16.mxu0 %v652
    %884 = vmatpush1.bf16.msra.mxu0 %v651
    %885 = vmatprep.subr.bf16.mxu0 %v656
    %886 = vmatpush1.bf16.msra.mxu0 %v655
    %887 = vmatprep.subr.bf16.mxu0 %v660
    %888 = vmatpush1.bf16.msra.mxu0 %v659
    %889 = vmatprep.subr.bf16.mxu0 %v664
    %890 = vmatpush1.bf16.msra.mxu0 %v663
    %891 = vmatprep.mubr.bf16.mxu0 %v66
    %892 = vmatmul.mubr.bf16.gmra.mrb[0].mxu0 %v65
    %v893 = vpop.f32.mrb[0].mxu0
    %v894 = vadd.f32 %v202, %v893
    %v895 = vpop.f32.mrb[0].mxu0
    %v896 = vadd.f32 %v206, %v895
    %v897 = vpop.f32.mrb[0].mxu0
    %v898 = vpop.f32.mrb[0].mxu0
    %899 = vdwg.mxu0
    %900 = vmatprep.subr.bf16.mxu0 %v668
    %901 = vmatpush1.bf16.msra.mxu0 %v667
    %902 = vmatprep.subr.bf16.mxu0 %v672
    %903 = vmatpush1.bf16.msra.mxu0 %v671
    %904 = vmatprep.subr.bf16.mxu0 %v676
    %905 = vmatpush1.bf16.msra.mxu0 %v675
    %906 = vmatprep.subr.bf16.mxu0 %v680
    %907 = vmatpush1.bf16.msra.mxu0 %v679
    %908 = vmatprep.subr.bf16.mxu0 %v684
    %909 = vmatpush1.bf16.msra.mxu0 %v683
    %910 = vmatprep.subr.bf16.mxu0 %v688
    %911 = vmatpush1.bf16.msra.mxu0 %v687
    %912 = vmatprep.subr.bf16.mxu0 %v692
    %913 = vmatpush1.bf16.msra.mxu0 %v691
    %914 = vmatprep.subr.bf16.mxu0 %v696
    %915 = vmatpush1.bf16.msra.mxu0 %v695
    %916 = vmatprep.subr.bf16.mxu0 %v700
    %917 = vmatpush1.bf16.msra.mxu0 %v699
    %918 = vmatprep.subr.bf16.mxu0 %v704
    %919 = vmatpush1.bf16.msra.mxu0 %v703
    %920 = vmatprep.subr.bf16.mxu0 %v708
    %921 = vmatpush1.bf16.msra.mxu0 %v707
    %922 = vmatprep.subr.bf16.mxu0 %v712
    %923 = vmatpush1.bf16.msra.mxu0 %v711
    %924 = vmatprep.subr.bf16.mxu0 %v716
    %925 = vmatpush1.bf16.msra.mxu0 %v715
    %926 = vmatprep.subr.bf16.mxu0 %v720
    %927 = vmatpush1.bf16.msra.mxu0 %v719
    %928 = vmatprep.subr.bf16.mxu0 %v724
    %929 = vmatpush1.bf16.msra.mxu0 %v723
    %930 = vmatprep.subr.bf16.mxu0 %v728
    %931 = vmatpush1.bf16.msra.mxu0 %v727
    %932 = vmatprep.mubr.bf16.mxu0 %v68
    %933 = vmatmul.mubr.bf16.gmra.mrb[0].mxu0 %v67
    %v934 = vpop.f32.mrb[0].mxu0
    %v935 = vadd.f32 %v894, %v934
    %v936 = vpop.f32.mrb[0].mxu0
    %v937 = vadd.f32 %v896, %v936
    %v938 = vpop.f32.mrb[0].mxu0
    %v939 = vpop.f32.mrb[0].mxu0
    %940 = vdwg.mxu0
    %941 = vmatprep.subr.bf16.mxu0 %v606
    %942 = vmatpush1.bf16.msra.mxu0 %v605
    %943 = vmatprep.subr.bf16.mxu0 %v610
    %944 = vmatpush1.bf16.msra.mxu0 %v609
    %945 = vmatprep.subr.bf16.mxu0 %v614
    %946 = vmatpush1.bf16.msra.mxu0 %v613
    %947 = vmatprep.subr.bf16.mxu0 %v618
    %948 = vmatpush1.bf16.msra.mxu0 %v617
    %949 = vmatprep.subr.bf16.mxu0 %v622
    %950 = vmatpush1.bf16.msra.mxu0 %v621
    %951 = vmatprep.subr.bf16.mxu0 %v626
    %952 = vmatpush1.bf16.msra.mxu0 %v625
    %953 = vmatprep.subr.bf16.mxu0 %v630
    %954 = vmatpush1.bf16.msra.mxu0 %v629
    %955 = vmatprep.subr.bf16.mxu0 %v634
    %956 = vmatpush1.bf16.msra.mxu0 %v633
    %957 = vmatprep.subr.bf16.mxu0 %v638
    %958 = vmatpush1.bf16.msra.mxu0 %v637
    %959 = vmatprep.subr.bf16.mxu0 %v642
    %960 = vmatpush1.bf16.msra.mxu0 %v641
    %961 = vmatprep.subr.bf16.mxu0 %v646
    %962 = vmatpush1.bf16.msra.mxu0 %v645
    %963 = vmatprep.subr.bf16.mxu0 %v650
    %964 = vmatpush1.bf16.msra.mxu0 %v649
    %965 = vmatprep.subr.bf16.mxu0 %v654
    %966 = vmatpush1.bf16.msra.mxu0 %v653
    %967 = vmatprep.subr.bf16.mxu0 %v658
    %968 = vmatpush1.bf16.msra.mxu0 %v657
    %969 = vmatprep.subr.bf16.mxu0 %v662
    %970 = vmatpush1.bf16.msra.mxu0 %v661
    %971 = vmatprep.subr.bf16.mxu0 %v666
    %972 = vmatpush1.bf16.msra.mxu0 %v665
    %973 = vmatprep.mubr.bf16.mxu0 %v66
    %974 = vmatmul.mubr.bf16.gmra.mrb[0].mxu0 %v65
    %v975 = vpop.f32.mrb[0].mxu0
    %v976 = vadd.f32 %v210, %v975
    %v977 = vpop.f32.mrb[0].mxu0
    %v978 = vadd.f32 %v214, %v977
    %v979 = vpop.f32.mrb[0].mxu0
    %v980 = vpop.f32.mrb[0].mxu0
    %981 = vdwg.mxu0
    %982 = vmatprep.subr.bf16.mxu0 %v670
    %983 = vmatpush1.bf16.msra.mxu0 %v669
    %984 = vmatprep.subr.bf16.mxu0 %v674
    %985 = vmatpush1.bf16.msra.mxu0 %v673
    %986 = vmatprep.subr.bf16.mxu0 %v678
    %987 = vmatpush1.bf16.msra.mxu0 %v677
    %988 = vmatprep.subr.bf16.mxu0 %v682
    %989 = vmatpush1.bf16.msra.mxu0 %v681
    %990 = vmatprep.subr.bf16.mxu0 %v686
    %991 = vmatpush1.bf16.msra.mxu0 %v685
    %992 = vmatprep.subr.bf16.mxu0 %v690
    %993 = vmatpush1.bf16.msra.mxu0 %v689
    %994 = vmatprep.subr.bf16.mxu0 %v694
    %995 = vmatpush1.bf16.msra.mxu0 %v693
    %996 = vmatprep.subr.bf16.mxu0 %v698
    %997 = vmatpush1.bf16.msra.mxu0 %v697
    %998 = vmatprep.subr.bf16.mxu0 %v702
    %999 = vmatpush1.bf16.msra.mxu0 %v701
    %1000 = vmatprep.subr.bf16.mxu0 %v706
    %1001 = vmatpush1.bf16.msra.mxu0 %v705
    %1002 = vmatprep.subr.bf16.mxu0 %v710
    %1003 = vmatpush1.bf16.msra.mxu0 %v709
    %1004 = vmatprep.subr.bf16.mxu0 %v714
    %1005 = vmatpush1.bf16.msra.mxu0 %v713
    %1006 = vmatprep.subr.bf16.mxu0 %v718
    %1007 = vmatpush1.bf16.msra.mxu0 %v717
    %1008 = vmatprep.subr.bf16.mxu0 %v722
    %1009 = vmatpush1.bf16.msra.mxu0 %v721
    %1010 = vmatprep.subr.bf16.mxu0 %v726
    %1011 = vmatpush1.bf16.msra.mxu0 %v725
    %1012 = vmatprep.subr.bf16.mxu0 %v730
    %1013 = vmatpush1.bf16.msra.mxu0 %v729
    %1014 = vmatprep.mubr.bf16.mxu0 %v68
    %1015 = vmatmul.mubr.bf16.gmra.mrb[0].mxu0 %v67
    %v1016 = vpop.f32.mrb[0].mxu0
    %v1017 = vadd.f32 %v976, %v1016
    %v1018 = vpop.f32.mrb[0].mxu0
    %v1019 = vadd.f32 %v978, %v1018
    %v1020 = vpop.f32.mrb[0].mxu0
    %v1021 = vpop.f32.mrb[0].mxu0
    %1022 = vdwg.mxu0
    %v1023 = vmax.f32 %v935, 0.0
    %v1024 = vmax.f32 %v937, 0.0
    %v1025 = vmax.f32 %v1017, 0.0
    %v1026 = vmax.f32 %v1019, 0.0
    %v1027 = vpack.c.bf16 %v1023, %v1023
    %v1028 = vpack.c.bf16 %v1024, %v1024
    %v1029 = vpack.c.bf16 %v1025, %v1025
    %v1030 = vpack.c.bf16 %v1026, %v1026
    %v1031 = vld [vmem:[#allocation7] sm:$0xff]
    %v1032 = vld [vmem:[#allocation7 + $0x8] sm:$0xf]
    %v1033 = vld [vmem:[#allocation7 + $0xc] sm:$0xff]
    %v1034 = vld [vmem:[#allocation7 + $0x14] sm:$0xf]
    %v1035 = vld [vmem:[#allocation7 + $0x18] sm:$0xff]
    %v1036 = vld [vmem:[#allocation7 + $0x20] sm:$0xf]
    %v1037 = vld [vmem:[#allocation7 + $0x24] sm:$0xff]
    %v1038 = vld [vmem:[#allocation7 + $0x2c] sm:$0xf]
    %v1039 = vld [vmem:[#allocation7 + $0x30] sm:$0xff]
    %v1040 = vld [vmem:[#allocation7 + $0x38] sm:$0xf]
    %v1041 = vld [vmem:[#allocation7 + $0x3c] sm:$0xff]
    %v1042 = vld [vmem:[#allocation7 + $0x44] sm:$0xf]
    %v1043 = vld [vmem:[#allocation7 + $0x48] sm:$0xff]
    %v1044 = vld [vmem:[#allocation7 + $0x50] sm:$0xf]
    %v1045 = vld [vmem:[#allocation7 + $0x54] sm:$0xff]
    %v1046 = vld [vmem:[#allocation7 + $0x5c] sm:$0xf]
    %v1047 = vld [vmem:[#allocation7 + $0x60] sm:$0xff]
    %v1048 = vld [vmem:[#allocation7 + $0x68] sm:$0xf]
    %v1049 = vld [vmem:[#allocation7 + $0x6c] sm:$0xff]
    %v1050 = vld [vmem:[#allocation7 + $0x74] sm:$0xf]
    %v1051 = vld [vmem:[#allocation7 + $0x78] sm:$0xff]
    %v1052 = vld [vmem:[#allocation7 + $0x80] sm:$0xf]
    %v1053 = vld [vmem:[#allocation7 + $0x84] sm:$0xff]
    %v1054 = vld [vmem:[#allocation7 + $0x8c] sm:$0xf]
    %v1055 = vld [vmem:[#allocation7 + $0x90] sm:$0xff]
    %v1056 = vld [vmem:[#allocation7 + $0x98] sm:$0xf]
    %v1057 = vld [vmem:[#allocation7 + $0x9c] sm:$0xff]
    %v1058 = vld [vmem:[#allocation7 + $0xa4] sm:$0xf]
    %v1059 = vld [vmem:[#allocation7 + $0xa8] sm:$0xff]
    %v1060 = vld [vmem:[#allocation7 + $0xb0] sm:$0xf]
    %v1061 = vld [vmem:[#allocation7 + $0xb4] sm:$0xff]
    %v1062 = vld [vmem:[#allocation7 + $0xbc] sm:$0xf]
    %v1063 = vld [vmem:[#allocation7 + $0xc0] sm:$0xff]
    %v1064 = vld [vmem:[#allocation7 + $0xc8] sm:$0xf]
    %v1065 = vld [vmem:[#allocation7 + $0xcc] sm:$0xff]
    %v1066 = vld [vmem:[#allocation7 + $0xd4] sm:$0xf]
    %v1067 = vld [vmem:[#allocation7 + $0xd8] sm:$0xff]
    %v1068 = vld [vmem:[#allocation7 + $0xe0] sm:$0xf]
    %v1069 = vld [vmem:[#allocation7 + $0xe4] sm:$0xff]
    %v1070 = vld [vmem:[#allocation7 + $0xec] sm:$0xf]
    %v1071 = vld [vmem:[#allocation7 + $0xf0] sm:$0xff]
    %v1072 = vld [vmem:[#allocation7 + $0xf8] sm:$0xf]
    %v1073 = vld [vmem:[#allocation7 + $0xfc] sm:$0xff]
    %v1074 = vld [vmem:[#allocation7 + $0x104] sm:$0xf]
    %v1075 = vld [vmem:[#allocation7 + $0x108] sm:$0xff]
    %v1076 = vld [vmem:[#allocation7 + $0x110] sm:$0xf]
    %v1077 = vld [vmem:[#allocation7 + $0x114] sm:$0xff]
    %v1078 = vld [vmem:[#allocation7 + $0x11c] sm:$0xf]
    %v1079 = vld [vmem:[#allocation7 + $0x120] sm:$0xff]
    %v1080 = vld [vmem:[#allocation7 + $0x128] sm:$0xf]
    %v1081 = vld [vmem:[#allocation7 + $0x12c] sm:$0xff]
    %v1082 = vld [vmem:[#allocation7 + $0x134] sm:$0xf]
    %v1083 = vld [vmem:[#allocation7 + $0x138] sm:$0xff]
    %v1084 = vld [vmem:[#allocation7 + $0x140] sm:$0xf]
    %v1085 = vld [vmem:[#allocation7 + $0x144] sm:$0xff]
    %v1086 = vld [vmem:[#allocation7 + $0x14c] sm:$0xf]
    %v1087 = vld [vmem:[#allocation7 + $0x150] sm:$0xff]
    %v1088 = vld [vmem:[#allocation7 + $0x158] sm:$0xf]
    %v1089 = vld [vmem:[#allocation7 + $0x15c] sm:$0xff]
    %v1090 = vld [vmem:[#allocation7 + $0x164] sm:$0xf]
    %v1091 = vld [vmem:[#allocation7 + $0x168] sm:$0xff]
    %v1092 = vld [vmem:[#allocation7 + $0x170] sm:$0xf]
    %v1093 = vld [vmem:[#allocation7 + $0x174] sm:$0xff]
    %v1094 = vld [vmem:[#allocation7 + $0x17c] sm:$0xf]
    %v1095 = vld [vmem:[#allocation7 + $0x180] sm:$0xff]
    %v1096 = vld [vmem:[#allocation7 + $0x188] sm:$0xf]
    %v1097 = vld [vmem:[#allocation7 + $0x18c] sm:$0xff]
    %v1098 = vld [vmem:[#allocation7 + $0x194] sm:$0xf]
    %v1099 = vld [vmem:[#allocation7 + $0x198] sm:$0xff]
    %v1100 = vld [vmem:[#allocation7 + $0x1a0] sm:$0xf]
    %v1101 = vld [vmem:[#allocation7 + $0x1a4] sm:$0xff]
    %v1102 = vld [vmem:[#allocation7 + $0x1ac] sm:$0xf]
    %v1103 = vld [vmem:[#allocation7 + $0x1b0] sm:$0xff]
    %v1104 = vld [vmem:[#allocation7 + $0x1b8] sm:$0xf]
    %v1105 = vld [vmem:[#allocation7 + $0x1bc] sm:$0xff]
    %v1106 = vld [vmem:[#allocation7 + $0x1c4] sm:$0xf]
    %v1107 = vld [vmem:[#allocation7 + $0x1c8] sm:$0xff]
    %v1108 = vld [vmem:[#allocation7 + $0x1d0] sm:$0xf]
    %v1109 = vld [vmem:[#allocation7 + $0x1d4] sm:$0xff]
    %v1110 = vld [vmem:[#allocation7 + $0x1dc] sm:$0xf]
    %v1111 = vld [vmem:[#allocation7 + $0x1e0] sm:$0xff]
    %v1112 = vld [vmem:[#allocation7 + $0x1e8] sm:$0xf]
    %v1113 = vld [vmem:[#allocation7 + $0x1ec] sm:$0xff]
    %v1114 = vld [vmem:[#allocation7 + $0x1f4] sm:$0xf]
    %v1115 = vld [vmem:[#allocation7 + $0x1f8] sm:$0xff]
    %v1116 = vld [vmem:[#allocation7 + $0x200] sm:$0xf]
    %v1117 = vld [vmem:[#allocation7 + $0x204] sm:$0xff]
    %v1118 = vld [vmem:[#allocation7 + $0x20c] sm:$0xf]
    %v1119 = vld [vmem:[#allocation7 + $0x210] sm:$0xff]
    %v1120 = vld [vmem:[#allocation7 + $0x218] sm:$0xf]
    %v1121 = vld [vmem:[#allocation7 + $0x21c] sm:$0xff]
    %v1122 = vld [vmem:[#allocation7 + $0x224] sm:$0xf]
    %v1123 = vld [vmem:[#allocation7 + $0x228] sm:$0xff]
    %v1124 = vld [vmem:[#allocation7 + $0x230] sm:$0xf]
    %v1125 = vld [vmem:[#allocation7 + $0x234] sm:$0xff]
    %v1126 = vld [vmem:[#allocation7 + $0x23c] sm:$0xf]
    %v1127 = vld [vmem:[#allocation7 + $0x240] sm:$0xff]
    %v1128 = vld [vmem:[#allocation7 + $0x248] sm:$0xf]
    %v1129 = vld [vmem:[#allocation7 + $0x24c] sm:$0xff]
    %v1130 = vld [vmem:[#allocation7 + $0x254] sm:$0xf]
    %v1131 = vld [vmem:[#allocation7 + $0x258] sm:$0xff]
    %v1132 = vld [vmem:[#allocation7 + $0x260] sm:$0xf]
    %v1133 = vld [vmem:[#allocation7 + $0x264] sm:$0xff]
    %v1134 = vld [vmem:[#allocation7 + $0x26c] sm:$0xf]
    %v1135 = vld [vmem:[#allocation7 + $0x270] sm:$0xff]
    %v1136 = vld [vmem:[#allocation7 + $0x278] sm:$0xf]
    %v1137 = vld [vmem:[#allocation7 + $0x27c] sm:$0xff]
    %v1138 = vld [vmem:[#allocation7 + $0x284] sm:$0xf]
    %v1139 = vld [vmem:[#allocation7 + $0x288] sm:$0xff]
    %v1140 = vld [vmem:[#allocation7 + $0x290] sm:$0xf]
    %v1141 = vld [vmem:[#allocation7 + $0x294] sm:$0xff]
    %v1142 = vld [vmem:[#allocation7 + $0x29c] sm:$0xf]
    %v1143 = vld [vmem:[#allocation7 + $0x2a0] sm:$0xff]
    %v1144 = vld [vmem:[#allocation7 + $0x2a8] sm:$0xf]
    %v1145 = vld [vmem:[#allocation7 + $0x2ac] sm:$0xff]
    %v1146 = vld [vmem:[#allocation7 + $0x2b4] sm:$0xf]
    %v1147 = vld [vmem:[#allocation7 + $0x2b8] sm:$0xff]
    %v1148 = vld [vmem:[#allocation7 + $0x2c0] sm:$0xf]
    %v1149 = vld [vmem:[#allocation7 + $0x2c4] sm:$0xff]
    %v1150 = vld [vmem:[#allocation7 + $0x2cc] sm:$0xf]
    %v1151 = vld [vmem:[#allocation7 + $0x2d0] sm:$0xff]
    %v1152 = vld [vmem:[#allocation7 + $0x2d8] sm:$0xf]
    %v1153 = vld [vmem:[#allocation7 + $0x2dc] sm:$0xff]
    %v1154 = vld [vmem:[#allocation7 + $0x2e4] sm:$0xf]
    %v1155 = vld [vmem:[#allocation7 + $0x2e8] sm:$0xff]
    %v1156 = vld [vmem:[#allocation7 + $0x2f0] sm:$0xf]
    %v1157 = vld [vmem:[#allocation7 + $0x2f4] sm:$0xff]
    %v1158 = vld [vmem:[#allocation7 + $0x2fc] sm:$0xf]
    %v1159 = vld [vmem:[%s4] sm:$0x7]
    %v1161 = vlaneseq
    %v1162 = vshrl.u32 %v1161, 7
    %v1163 = vsub.s32 0, %v1162
    %v1164 = vrot.slane %v1159, %v1163
    %v1165 = vlaneseq
    %v1166 = vshrl.u32 %v1165, 7
    %v1167 = vsub.s32 1, %v1166
    %v1168 = vrot.slane %v1159, %v1167
    %v1169 = vlaneseq
    %v1170 = vshrl.u32 %v1169, 7
    %v1171 = vsub.s32 2, %v1170
    %v1172 = vrot.slane %v1159, %v1171
    %v1304 = vunpack.c.l.b16 %v1031
    %v1305 = vunpack.c.h.b16 %v1031
    %v1306 = vunpack.c.l.b16 %v1032
    %v1307 = vunpack.c.l.b16 %v1033
    %v1308 = vunpack.c.h.b16 %v1033
    %v1309 = vunpack.c.l.b16 %v1034
    %v1310 = vunpack.c.l.b16 %v1035
    %v1311 = vunpack.c.h.b16 %v1035
    %v1312 = vunpack.c.l.b16 %v1036
    %v1313 = vunpack.c.l.b16 %v1037
    %v1314 = vunpack.c.h.b16 %v1037
    %v1315 = vunpack.c.l.b16 %v1038
    %v1316 = vunpack.c.l.b16 %v1039
    %v1317 = vunpack.c.h.b16 %v1039
    %v1318 = vunpack.c.l.b16 %v1040
    %v1319 = vunpack.c.l.b16 %v1041
    %v1320 = vunpack.c.h.b16 %v1041
    %v1321 = vunpack.c.l.b16 %v1042
    %v1322 = vunpack.c.l.b16 %v1043
    %v1323 = vunpack.c.h.b16 %v1043
    %v1324 = vunpack.c.l.b16 %v1044
    %v1325 = vunpack.c.l.b16 %v1045
    %v1326 = vunpack.c.h.b16 %v1045
    %v1327 = vunpack.c.l.b16 %v1046
    %v1328 = vunpack.c.l.b16 %v1047
    %v1329 = vunpack.c.h.b16 %v1047
    %v1330 = vunpack.c.l.b16 %v1048
    %v1331 = vunpack.c.l.b16 %v1049
    %v1332 = vunpack.c.h.b16 %v1049
    %v1333 = vunpack.c.l.b16 %v1050
    %v1334 = vunpack.c.l.b16 %v1051
    %v1335 = vunpack.c.h.b16 %v1051
    %v1336 = vunpack.c.l.b16 %v1052
    %v1337 = vunpack.c.l.b16 %v1053
    %v1338 = vunpack.c.h.b16 %v1053
    %v1339 = vunpack.c.l.b16 %v1054
    %v1340 = vunpack.c.l.b16 %v1055
    %v1341 = vunpack.c.h.b16 %v1055
    %v1342 = vunpack.c.l.b16 %v1056
    %v1343 = vunpack.c.l.b16 %v1057
    %v1344 = vunpack.c.h.b16 %v1057
    %v1345 = vunpack.c.l.b16 %v1058
    %v1346 = vunpack.c.l.b16 %v1059
    %v1347 = vunpack.c.h.b16 %v1059
    %v1348 = vunpack.c.l.b16 %v1060
    %v1349 = vunpack.c.l.b16 %v1061
    %v1350 = vunpack.c.h.b16 %v1061
    %v1351 = vunpack.c.l.b16 %v1062
    %v1352 = vunpack.c.l.b16 %v1063
    %v1353 = vunpack.c.h.b16 %v1063
    %v1354 = vunpack.c.l.b16 %v1064
    %v1355 = vunpack.c.l.b16 %v1065
    %v1356 = vunpack.c.h.b16 %v1065
    %v1357 = vunpack.c.l.b16 %v1066
    %v1358 = vunpack.c.l.b16 %v1067
    %v1359 = vunpack.c.h.b16 %v1067
    %v1360 = vunpack.c.l.b16 %v1068
    %v1361 = vunpack.c.l.b16 %v1069
    %v1362 = vunpack.c.h.b16 %v1069
    %v1363 = vunpack.c.l.b16 %v1070
    %v1364 = vunpack.c.l.b16 %v1071
    %v1365 = vunpack.c.h.b16 %v1071
    %v1366 = vunpack.c.l.b16 %v1072
    %v1367 = vunpack.c.l.b16 %v1073
    %v1368 = vunpack.c.h.b16 %v1073
    %v1369 = vunpack.c.l.b16 %v1074
    %v1370 = vunpack.c.l.b16 %v1075
    %v1371 = vunpack.c.h.b16 %v1075
    %v1372 = vunpack.c.l.b16 %v1076
    %v1373 = vunpack.c.l.b16 %v1077
    %v1374 = vunpack.c.h.b16 %v1077
    %v1375 = vunpack.c.l.b16 %v1078
    %v1376 = vunpack.c.l.b16 %v1079
    %v1377 = vunpack.c.h.b16 %v1079
    %v1378 = vunpack.c.l.b16 %v1080
    %v1379 = vunpack.c.l.b16 %v1081
    %v1380 = vunpack.c.h.b16 %v1081
    %v1381 = vunpack.c.l.b16 %v1082
    %v1382 = vunpack.c.l.b16 %v1083
    %v1383 = vunpack.c.h.b16 %v1083
    %v1384 = vunpack.c.l.b16 %v1084
    %v1385 = vunpack.c.l.b16 %v1085
    %v1386 = vunpack.c.h.b16 %v1085
    %v1387 = vunpack.c.l.b16 %v1086
    %v1388 = vunpack.c.l.b16 %v1087
    %v1389 = vunpack.c.h.b16 %v1087
    %v1390 = vunpack.c.l.b16 %v1088
    %v1391 = vunpack.c.l.b16 %v1089
    %v1392 = vunpack.c.h.b16 %v1089
    %v1393 = vunpack.c.l.b16 %v1090
    %v1394 = vunpack.c.l.b16 %v1091
    %v1395 = vunpack.c.h.b16 %v1091
    %v1396 = vunpack.c.l.b16 %v1092
    %v1397 = vunpack.c.l.b16 %v1093
    %v1398 = vunpack.c.h.b16 %v1093
    %v1399 = vunpack.c.l.b16 %v1094
    %v1400 = vunpack.c.l.b16 %v1095
    %v1401 = vunpack.c.h.b16 %v1095
    %v1402 = vunpack.c.l.b16 %v1096
    %v1403 = vunpack.c.l.b16 %v1097
    %v1404 = vunpack.c.h.b16 %v1097
    %v1405 = vunpack.c.l.b16 %v1098
    %v1406 = vunpack.c.l.b16 %v1099
    %v1407 = vunpack.c.h.b16 %v1099
    %v1408 = vunpack.c.l.b16 %v1100
    %v1409 = vunpack.c.l.b16 %v1101
    %v1410 = vunpack.c.h.b16 %v1101
    %v1411 = vunpack.c.l.b16 %v1102
    %v1412 = vunpack.c.l.b16 %v1103
    %v1413 = vunpack.c.h.b16 %v1103
    %v1414 = vunpack.c.l.b16 %v1104
    %v1415 = vunpack.c.l.b16 %v1105
    %v1416 = vunpack.c.h.b16 %v1105
    %v1417 = vunpack.c.l.b16 %v1106
    %v1418 = vunpack.c.l.b16 %v1107
    %v1419 = vunpack.c.h.b16 %v1107
    %v1420 = vunpack.c.l.b16 %v1108
    %v1421 = vunpack.c.l.b16 %v1109
    %v1422 = vunpack.c.h.b16 %v1109
    %v1423 = vunpack.c.l.b16 %v1110
    %v1424 = vunpack.c.l.b16 %v1111
    %v1425 = vunpack.c.h.b16 %v1111
    %v1426 = vunpack.c.l.b16 %v1112
    %v1427 = vunpack.c.l.b16 %v1113
    %v1428 = vunpack.c.h.b16 %v1113
    %v1429 = vunpack.c.l.b16 %v1114
    %v1430 = vunpack.c.l.b16 %v1115
    %v1431 = vunpack.c.h.b16 %v1115
    %v1432 = vunpack.c.l.b16 %v1116
    %v1433 = vunpack.c.l.b16 %v1117
    %v1434 = vunpack.c.h.b16 %v1117
    %v1435 = vunpack.c.l.b16 %v1118
    %v1436 = vunpack.c.l.b16 %v1119
    %v1437 = vunpack.c.h.b16 %v1119
    %v1438 = vunpack.c.l.b16 %v1120
    %v1439 = vunpack.c.l.b16 %v1121
    %v1440 = vunpack.c.h.b16 %v1121
    %v1441 = vunpack.c.l.b16 %v1122
    %v1442 = vunpack.c.l.b16 %v1123
    %v1443 = vunpack.c.h.b16 %v1123
    %v1444 = vunpack.c.l.b16 %v1124
    %v1445 = vunpack.c.l.b16 %v1125
    %v1446 = vunpack.c.h.b16 %v1125
    %v1447 = vunpack.c.l.b16 %v1126
    %v1448 = vunpack.c.l.b16 %v1127
    %v1449 = vunpack.c.h.b16 %v1127
    %v1450 = vunpack.c.l.b16 %v1128
    %v1451 = vunpack.c.l.b16 %v1129
    %v1452 = vunpack.c.h.b16 %v1129
    %v1453 = vunpack.c.l.b16 %v1130
    %v1454 = vunpack.c.l.b16 %v1131
    %v1455 = vunpack.c.h.b16 %v1131
    %v1456 = vunpack.c.l.b16 %v1132
    %v1457 = vunpack.c.l.b16 %v1133
    %v1458 = vunpack.c.h.b16 %v1133
    %v1459 = vunpack.c.l.b16 %v1134
    %v1460 = vunpack.c.l.b16 %v1135
    %v1461 = vunpack.c.h.b16 %v1135
    %v1462 = vunpack.c.l.b16 %v1136
    %v1463 = vunpack.c.l.b16 %v1137
    %v1464 = vunpack.c.h.b16 %v1137
    %v1465 = vunpack.c.l.b16 %v1138
    %v1466 = vunpack.c.l.b16 %v1139
    %v1467 = vunpack.c.h.b16 %v1139
    %v1468 = vunpack.c.l.b16 %v1140
    %v1469 = vunpack.c.l.b16 %v1141
    %v1470 = vunpack.c.h.b16 %v1141
    %v1471 = vunpack.c.l.b16 %v1142
    %v1472 = vunpack.c.l.b16 %v1143
    %v1473 = vunpack.c.h.b16 %v1143
    %v1474 = vunpack.c.l.b16 %v1144
    %v1475 = vunpack.c.l.b16 %v1145
    %v1476 = vunpack.c.h.b16 %v1145
    %v1477 = vunpack.c.l.b16 %v1146
    %v1478 = vunpack.c.l.b16 %v1147
    %v1479 = vunpack.c.h.b16 %v1147
    %v1480 = vunpack.c.l.b16 %v1148
    %v1481 = vunpack.c.l.b16 %v1149
    %v1482 = vunpack.c.h.b16 %v1149
    %v1483 = vunpack.c.l.b16 %v1150
    %v1484 = vunpack.c.l.b16 %v1151
    %v1485 = vunpack.c.h.b16 %v1151
    %v1486 = vunpack.c.l.b16 %v1152
    %v1487 = vunpack.c.l.b16 %v1153
    %v1488 = vunpack.c.h.b16 %v1153
    %v1489 = vunpack.c.l.b16 %v1154
    %v1490 = vunpack.c.l.b16 %v1155
    %v1491 = vunpack.c.h.b16 %v1155
    %v1492 = vunpack.c.l.b16 %v1156
    %v1493 = vunpack.c.l.b16 %v1157
    %v1494 = vunpack.c.h.b16 %v1157
    %v1495 = vunpack.c.l.b16 %v1158
    %v1496 = vpack.c.b16 %v1307, %v1304
    %v1497 = vpack.c.b16 %v1308, %v1305
    %v1498 = vpack.c.b16 %v1309, %v1306
    %v1499 = vpack.c.b16 %v1313, %v1310
    %v1500 = vpack.c.b16 %v1314, %v1311
    %v1501 = vpack.c.b16 %v1315, %v1312
    %v1502 = vpack.c.b16 %v1319, %v1316
    %v1503 = vpack.c.b16 %v1320, %v1317
    %v1504 = vpack.c.b16 %v1321, %v1318
    %v1505 = vpack.c.b16 %v1325, %v1322
    %v1506 = vpack.c.b16 %v1326, %v1323
    %v1507 = vpack.c.b16 %v1327, %v1324
    %v1508 = vpack.c.b16 %v1331, %v1328
    %v1509 = vpack.c.b16 %v1332, %v1329
    %v1510 = vpack.c.b16 %v1333, %v1330
    %v1511 = vpack.c.b16 %v1337, %v1334
    %v1512 = vpack.c.b16 %v1338, %v1335
    %v1513 = vpack.c.b16 %v1339, %v1336
    %v1514 = vpack.c.b16 %v1343, %v1340
    %v1515 = vpack.c.b16 %v1344, %v1341
    %v1516 = vpack.c.b16 %v1345, %v1342
    %v1517 = vpack.c.b16 %v1349, %v1346
    %v1518 = vpack.c.b16 %v1350, %v1347
    %v1519 = vpack.c.b16 %v1351, %v1348
    %v1520 = vpack.c.b16 %v1355, %v1352
    %v1521 = vpack.c.b16 %v1356, %v1353
    %v1522 = vpack.c.b16 %v1357, %v1354
    %v1523 = vpack.c.b16 %v1361, %v1358
    %v1524 = vpack.c.b16 %v1362, %v1359
    %v1525 = vpack.c.b16 %v1363, %v1360
    %v1526 = vpack.c.b16 %v1367, %v1364
    %v1527 = vpack.c.b16 %v1368, %v1365
    %v1528 = vpack.c.b16 %v1369, %v1366
    %v1529 = vpack.c.b16 %v1373, %v1370
    %v1530 = vpack.c.b16 %v1374, %v1371
    %v1531 = vpack.c.b16 %v1375, %v1372
    %v1532 = vpack.c.b16 %v1379, %v1376
    %v1533 = vpack.c.b16 %v1380, %v1377
    %v1534 = vpack.c.b16 %v1381, %v1378
    %v1535 = vpack.c.b16 %v1385, %v1382
    %v1536 = vpack.c.b16 %v1386, %v1383
    %v1537 = vpack.c.b16 %v1387, %v1384
    %v1538 = vpack.c.b16 %v1391, %v1388
    %v1539 = vpack.c.b16 %v1392, %v1389
    %v1540 = vpack.c.b16 %v1393, %v1390
    %v1541 = vpack.c.b16 %v1397, %v1394
    %v1542 = vpack.c.b16 %v1398, %v1395
    %v1543 = vpack.c.b16 %v1399, %v1396
    %v1544 = vpack.c.b16 %v1403, %v1400
    %v1545 = vpack.c.b16 %v1404, %v1401
    %v1546 = vpack.c.b16 %v1405, %v1402
    %v1547 = vpack.c.b16 %v1409, %v1406
    %v1548 = vpack.c.b16 %v1410, %v1407
    %v1549 = vpack.c.b16 %v1411, %v1408
    %v1550 = vpack.c.b16 %v1415, %v1412
    %v1551 = vpack.c.b16 %v1416, %v1413
    %v1552 = vpack.c.b16 %v1417, %v1414
    %v1553 = vpack.c.b16 %v1421, %v1418
    %v1554 = vpack.c.b16 %v1422, %v1419
    %v1555 = vpack.c.b16 %v1423, %v1420
    %v1556 = vpack.c.b16 %v1427, %v1424
    %v1557 = vpack.c.b16 %v1428, %v1425
    %v1558 = vpack.c.b16 %v1429, %v1426
    %v1559 = vpack.c.b16 %v1433, %v1430
    %v1560 = vpack.c.b16 %v1434, %v1431
    %v1561 = vpack.c.b16 %v1435, %v1432
    %v1562 = vpack.c.b16 %v1439, %v1436
    %v1563 = vpack.c.b16 %v1440, %v1437
    %v1564 = vpack.c.b16 %v1441, %v1438
    %v1565 = vpack.c.b16 %v1445, %v1442
    %v1566 = vpack.c.b16 %v1446, %v1443
    %v1567 = vpack.c.b16 %v1447, %v1444
    %v1568 = vpack.c.b16 %v1451, %v1448
    %v1569 = vpack.c.b16 %v1452, %v1449
    %v1570 = vpack.c.b16 %v1453, %v1450
    %v1571 = vpack.c.b16 %v1457, %v1454
    %v1572 = vpack.c.b16 %v1458, %v1455
    %v1573 = vpack.c.b16 %v1459, %v1456
    %v1574 = vpack.c.b16 %v1463, %v1460
    %v1575 = vpack.c.b16 %v1464, %v1461
    %v1576 = vpack.c.b16 %v1465, %v1462
    %v1577 = vpack.c.b16 %v1469, %v1466
    %v1578 = vpack.c.b16 %v1470, %v1467
    %v1579 = vpack.c.b16 %v1471, %v1468
    %v1580 = vpack.c.b16 %v1475, %v1472
    %v1581 = vpack.c.b16 %v1476, %v1473
    %v1582 = vpack.c.b16 %v1477, %v1474
    %v1583 = vpack.c.b16 %v1481, %v1478
    %v1584 = vpack.c.b16 %v1482, %v1479
    %v1585 = vpack.c.b16 %v1483, %v1480
    %v1586 = vpack.c.b16 %v1487, %v1484
    %v1587 = vpack.c.b16 %v1488, %v1485
    %v1588 = vpack.c.b16 %v1489, %v1486
    %v1589 = vpack.c.b16 %v1493, %v1490
    %v1590 = vpack.c.b16 %v1494, %v1491
    %v1591 = vpack.c.b16 %v1495, %v1492
    %1688 = vmatprep.subr.bf16.mxu0 %v1497
    %1689 = vmatpush1.bf16.msra.mxu0 %v1496
    %1690 = vmatprep.subr.bf16.mxu0 %v1500
    %1691 = vmatpush1.bf16.msra.mxu0 %v1499
    %1692 = vmatprep.subr.bf16.mxu0 %v1503
    %1693 = vmatpush1.bf16.msra.mxu0 %v1502
    %1694 = vmatprep.subr.bf16.mxu0 %v1506
    %1695 = vmatpush1.bf16.msra.mxu0 %v1505
    %1696 = vmatprep.subr.bf16.mxu0 %v1509
    %1697 = vmatpush1.bf16.msra.mxu0 %v1508
    %1698 = vmatprep.subr.bf16.mxu0 %v1512
    %1699 = vmatpush1.bf16.msra.mxu0 %v1511
    %1700 = vmatprep.subr.bf16.mxu0 %v1515
    %1701 = vmatpush1.bf16.msra.mxu0 %v1514
    %1702 = vmatprep.subr.bf16.mxu0 %v1518
    %1703 = vmatpush1.bf16.msra.mxu0 %v1517
    %1704 = vmatprep.subr.bf16.mxu0 %v1521
    %1705 = vmatpush1.bf16.msra.mxu0 %v1520
    %1706 = vmatprep.subr.bf16.mxu0 %v1524
    %1707 = vmatpush1.bf16.msra.mxu0 %v1523
    %1708 = vmatprep.subr.bf16.mxu0 %v1527
    %1709 = vmatpush1.bf16.msra.mxu0 %v1526
    %1710 = vmatprep.subr.bf16.mxu0 %v1530
    %1711 = vmatpush1.bf16.msra.mxu0 %v1529
    %1712 = vmatprep.subr.bf16.mxu0 %v1533
    %1713 = vmatpush1.bf16.msra.mxu0 %v1532
    %1714 = vmatprep.subr.bf16.mxu0 %v1536
    %1715 = vmatpush1.bf16.msra.mxu0 %v1535
    %1716 = vmatprep.subr.bf16.mxu0 %v1539
    %1717 = vmatpush1.bf16.msra.mxu0 %v1538
    %1718 = vmatprep.subr.bf16.mxu0 %v1542
    %1719 = vmatpush1.bf16.msra.mxu0 %v1541
    %1720 = vmatprep.mubr.bf16.mxu0 %v1028
    %1721 = vmatmul.mubr.bf16.gmra.mrb[0].mxu0 %v1027
    %v1722 = vpop.f32.mrb[0].mxu0
    %v1723 = vadd.f32 %v1164, %v1722
    %v1724 = vpop.f32.mrb[0].mxu0
    %v1725 = vadd.f32 %v1168, %v1724
    %v1726 = vpop.f32.mrb[0].mxu0
    %v1727 = vpop.f32.mrb[0].mxu0
    %1728 = vdwg.mxu0
    %1729 = vmatprep.subr.bf16.mxu0 %v1545
    %1730 = vmatpush1.bf16.msra.mxu0 %v1544
    %1731 = vmatprep.subr.bf16.mxu0 %v1548
    %1732 = vmatpush1.bf16.msra.mxu0 %v1547
    %1733 = vmatprep.subr.bf16.mxu0 %v1551
    %1734 = vmatpush1.bf16.msra.mxu0 %v1550
    %1735 = vmatprep.subr.bf16.mxu0 %v1554
    %1736 = vmatpush1.bf16.msra.mxu0 %v1553
    %1737 = vmatprep.subr.bf16.mxu0 %v1557
    %1738 = vmatpush1.bf16.msra.mxu0 %v1556
    %1739 = vmatprep.subr.bf16.mxu0 %v1560
    %1740 = vmatpush1.bf16.msra.mxu0 %v1559
    %1741 = vmatprep.subr.bf16.mxu0 %v1563
    %1742 = vmatpush1.bf16.msra.mxu0 %v1562
    %1743 = vmatprep.subr.bf16.mxu0 %v1566
    %1744 = vmatpush1.bf16.msra.mxu0 %v1565
    %1745 = vmatprep.subr.bf16.mxu0 %v1569
    %1746 = vmatpush1.bf16.msra.mxu0 %v1568
    %1747 = vmatprep.subr.bf16.mxu0 %v1572
    %1748 = vmatpush1.bf16.msra.mxu0 %v1571
    %1749 = vmatprep.subr.bf16.mxu0 %v1575
    %1750 = vmatpush1.bf16.msra.mxu0 %v1574
    %1751 = vmatprep.subr.bf16.mxu0 %v1578
    %1752 = vmatpush1.bf16.msra.mxu0 %v1577
    %1753 = vmatprep.subr.bf16.mxu0 %v1581
    %1754 = vmatpush1.bf16.msra.mxu0 %v1580
    %1755 = vmatprep.subr.bf16.mxu0 %v1584
    %1756 = vmatpush1.bf16.msra.mxu0 %v1583
    %1757 = vmatprep.subr.bf16.mxu0 %v1587
    %1758 = vmatpush1.bf16.msra.mxu0 %v1586
    %1759 = vmatprep.subr.bf16.mxu0 %v1590
    %1760 = vmatpush1.bf16.msra.mxu0 %v1589
    %1761 = vmatprep.mubr.bf16.mxu0 %v1030
    %1762 = vmatmul.mubr.bf16.gmra.mrb[0].mxu0 %v1029
    %v1763 = vpop.f32.mrb[0].mxu0
    %v1764 = vadd.f32 %v1723, %v1763
    %v1765 = vpop.f32.mrb[0].mxu0
    %v1766 = vadd.f32 %v1725, %v1765
    %v1767 = vpop.f32.mrb[0].mxu0
    %v1768 = vpop.f32.mrb[0].mxu0
    %1769 = vdwg.mxu0
    %1770 = vmatprep.subr.bf16.mxu0 0
    %1771 = vmatpush1.bf16.msra.mxu0 %v1498
    %1772 = vmatprep.subr.bf16.mxu0 0
    %1773 = vmatpush1.bf16.msra.mxu0 %v1501
    %1774 = vmatprep.subr.bf16.mxu0 0
    %1775 = vmatpush1.bf16.msra.mxu0 %v1504
    %1776 = vmatprep.subr.bf16.mxu0 0
    %1777 = vmatpush1.bf16.msra.mxu0 %v1507
    %1778 = vmatprep.subr.bf16.mxu0 0
    %1779 = vmatpush1.bf16.msra.mxu0 %v1510
    %1780 = vmatprep.subr.bf16.mxu0 0
    %1781 = vmatpush1.bf16.msra.mxu0 %v1513
    %1782 = vmatprep.subr.bf16.mxu0 0
    %1783 = vmatpush1.bf16.msra.mxu0 %v1516
    %1784 = vmatprep.subr.bf16.mxu0 0
    %1785 = vmatpush1.bf16.msra.mxu0 %v1519
    %1786 = vmatprep.subr.bf16.mxu0 0
    %1787 = vmatpush1.bf16.msra.mxu0 %v1522
    %1788 = vmatprep.subr.bf16.mxu0 0
    %1789 = vmatpush1.bf16.msra.mxu0 %v1525
    %1790 = vmatprep.subr.bf16.mxu0 0
    %1791 = vmatpush1.bf16.msra.mxu0 %v1528
    %1792 = vmatprep.subr.bf16.mxu0 0
    %1793 = vmatpush1.bf16.msra.mxu0 %v1531
    %1794 = vmatprep.subr.bf16.mxu0 0
    %1795 = vmatpush1.bf16.msra.mxu0 %v1534
    %1796 = vmatprep.subr.bf16.mxu0 0
    %1797 = vmatpush1.bf16.msra.mxu0 %v1537
    %1798 = vmatprep.subr.bf16.mxu0 0
    %1799 = vmatpush1.bf16.msra.mxu0 %v1540
    %1800 = vmatprep.subr.bf16.mxu0 0
    %1801 = vmatpush1.bf16.msra.mxu0 %v1543
    %1802 = vmatprep.mubr.bf16.mxu0 %v1028
    %1803 = vmatmul.mubr.bf16.gmra.mrb[0].mxu0 %v1027
    %v1804 = vpop.f32.mrb[0].mxu0
    %v1805 = vadd.f32 %v1172, %v1804
    %v1806 = vpop.f32.mrb[0].mxu0
    %v1807 = vpop.f32.mrb[0].mxu0
    %v1808 = vpop.f32.mrb[0].mxu0
    %1809 = vdwg.mxu0
    %1810 = vmatprep.subr.bf16.mxu0 0
    %1811 = vmatpush1.bf16.msra.mxu0 %v1546
    %1812 = vmatprep.subr.bf16.mxu0 0
    %1813 = vmatpush1.bf16.msra.mxu0 %v1549
    %1814 = vmatprep.subr.bf16.mxu0 0
    %1815 = vmatpush1.bf16.msra.mxu0 %v1552
    %1816 = vmatprep.subr.bf16.mxu0 0
    %1817 = vmatpush1.bf16.msra.mxu0 %v1555
    %1818 = vmatprep.subr.bf16.mxu0 0
    %1819 = vmatpush1.bf16.msra.mxu0 %v1558
    %1820 = vmatprep.subr.bf16.mxu0 0
    %1821 = vmatpush1.bf16.msra.mxu0 %v1561
    %1822 = vmatprep.subr.bf16.mxu0 0
    %1823 = vmatpush1.bf16.msra.mxu0 %v1564
    %1824 = vmatprep.subr.bf16.mxu0 0
    %1825 = vmatpush1.bf16.msra.mxu0 %v1567
    %1826 = vmatprep.subr.bf16.mxu0 0
    %1827 = vmatpush1.bf16.msra.mxu0 %v1570
    %1828 = vmatprep.subr.bf16.mxu0 0
    %1829 = vmatpush1.bf16.msra.mxu0 %v1573
    %1830 = vmatprep.subr.bf16.mxu0 0
    %1831 = vmatpush1.bf16.msra.mxu0 %v1576
    %1832 = vmatprep.subr.bf16.mxu0 0
    %1833 = vmatpush1.bf16.msra.mxu0 %v1579
    %1834 = vmatprep.subr.bf16.mxu0 0
    %1835 = vmatpush1.bf16.msra.mxu0 %v1582
    %1836 = vmatprep.subr.bf16.mxu0 0
    %1837 = vmatpush1.bf16.msra.mxu0 %v1585
    %1838 = vmatprep.subr.bf16.mxu0 0
    %1839 = vmatpush1.bf16.msra.mxu0 %v1588
    %1840 = vmatprep.subr.bf16.mxu0 0
    %1841 = vmatpush1.bf16.msra.mxu0 %v1591
    %1842 = vmatprep.mubr.bf16.mxu0 %v1030
    %1843 = vmatmul.mubr.bf16.gmra.mrb[0].mxu0 %v1029
    %v1844 = vpop.f32.mrb[0].mxu0
    %v1845 = vadd.f32 %v1805, %v1844
    %v1846 = vpop.f32.mrb[0].mxu0
    %v1847 = vpop.f32.mrb[0].mxu0
    %v1848 = vpop.f32.mrb[0].mxu0
    %1849 = vdwg.mxu0
    %1850 = vst [vmem:[#allocation8] sm:$0xff] %v1764
    %1851 = vst [vmem:[#allocation8 + $0x8] sm:$0xff] %v1766
    %1852 = vst [vmem:[#allocation8 + $0x10] sm:$0xff] %v1845
    // Predicated region
    $region34: #{tpu_custom_call.1} parent=1 // pred_check
      _
    $region35: #{tpu_custom_call.1} parent=1 // pred_check_branch
      %1854 = sbr.rel (0) target = $region37
    $region36: #{tpu_custom_call.1} parent=1 // pred_region
      %s1856 = ssub.s32 384, 384
      %1857 = vsyncadd [#allocation4], %s1856
      %s1859 = sshll.u32 [#allocation8], 4
      %s1860 = int_to_ptr.vmem [resolvable:$true] %s1859
      %1862 = dma.vmem_to_hbm [thread:$0]  %s1860, 384, %s5, [#allocation4]
    $region37: #{tpu_custom_call.1} parent=1 // pred_fallthru
      _
    // Predicated region
    $region38: #{tpu_custom_call.1} parent=1 // pred_check
      _
    $region39: #{tpu_custom_call.1} parent=1 // pred_check_branch
      %1864 = sbr.rel (0) target = $region41
    $region40: #{tpu_custom_call.1} parent=1 // pred_region
      %1865 = dma.done [#allocation4], 384
    $region41: #{tpu_custom_call.1} parent=1 // pred_fallthru
      _
    %1866 = vsyncpa [#allocation3], 1
    %1867 = vsyncpa [#allocation6], 1
    %1868 = vsyncpa [#allocation4], 1

</llo_original>
